<compile_context>
chip_gen: v7x
topology: tpu7x:2x2x1
jax: 0.10.0
libtpu: 0.0.40
codegen_flags: <defaults>
</compile_context>

<pallas_src>
import jax
import jax.numpy as jnp
from jax.experimental import pallas as pl
from jax.experimental.pallas import tpu as pltpu

# ---- scaled-down (but structurally identical) SSGRL dimensions -------------
B  = 2          # batch
H  = 4          # feature-map height
W  = 4          # feature-map width
S  = H * W      # flattened spatial           (196 at the real input resolution)
CB = 256        # backbone output channels    (2048 in the real model)
D  = 128        # imageFeatureDim             (1024)  != CB -> changeChannel applies
DM = 128        # intermediaDim               (512)
C  = 16         # classNum                    (80)
DW = 32         # wordFeatureDim              (300)


def _elementwise_dtype():
    """bf16 elementwise/transcendental math on v6e / v7x; f32 on v5e and older
    (those generations have no bf16 VPU/EUP)."""
    try:
        kind = jax.devices()[0].device_kind.lower()
    except Exception:
        return jnp.float32
    if "v6" in kind or "v7" in kind or "7x" in kind:
        return jnp.bfloat16
    return jnp.float32


def ssgrl_kernel(fm_ref, wcc_ref, bnsh_ref, w1_ref, wordi_ref, v_ref, c0_ref,
                 out_ref, xb_ref, img_ref, coef_ref):
    """One grid step processes one batch element end-to-end.

    fm_ref   : (1, S, CB)  backbone feature map (channels-last, spatially flattened)
    wcc_ref  : (CB, D)     1x1-conv weight with BN scale folded in (bf16)
    bnsh_ref : (1, D)      folded BN shift (f32)
    w1_ref   : (D, DM)     fc1 weight (bf16, bias-free as in SemanticDecoupling)
    wordi_ref: (C, DM)     fc2(wordFeatures), precomputed (batch-invariant)
    v_ref    : (1, DM)     fc3∘fc4 folded weight vector (w3 @ w4^T)
    c0_ref   : (1, 1)      fc3∘fc4 folded bias (SMEM scalar)
    out_ref  : (1, C, D)   semantic feature for this batch element
    xb_ref   : (S, D)      VMEM scratch, changeChannel output (bf16 MXU operand)
    img_ref  : (S, DM)     VMEM scratch, fc1 output (elementwise dtype)
    coef_ref : (C, S)      VMEM scratch, attention logits (f32)
    """
    # ---- per-image projections (MXU), computed once per grid step ----
    fm = fm_ref[0]                                                     # (S, CB) bf16
    x = jnp.dot(fm, wcc_ref[...], preferred_element_type=jnp.float32)  # (S, D) f32
    x = x + bnsh_ref[...]                                              # folded BN shift
    xb_ref[...] = x.astype(xb_ref.dtype)                               # bf16
    img = jnp.dot(xb_ref[...], w1_ref[...],
                  preferred_element_type=jnp.float32)                  # (S, DM) fc1
    img_ref[...] = img.astype(img_ref.dtype)                           # bf16 on v6e/v7x

    v_b = v_ref[...]                                                   # (1, DM), hoisted
    c0 = c0_ref[0, 0]                                                  # scalar (SMEM)

    n_classes = wordi_ref.shape[0]

    # ---- per-class attention logits ----
    # A rolled loop (not an unrolled Python for) so the (S, DM) tanh temp has a
    # bounded live range; the DM reduction is an MXU matvec with f32 accumulation.
    @pl.loop(0, n_classes)
    def _(c):
        wi_c = wordi_ref[pl.ds(c, 1), :]                               # (1, DM)
        t = jnp.tanh(wi_c * img_ref[...])                              # (S, DM) EW dtype
        row = jax.lax.dot_general(v_b, t, (((1,), (1,)), ((), ())),
                                  preferred_element_type=jnp.float32)  # (1, S) f32
        coef_ref[pl.ds(c, 1), :] = row

    # ---- softmax over spatial positions (per class) + attention-weighted sum ----
    # (c0 is a constant over spatial positions so it cancels in the softmax; kept
    #  for fidelity with the PyTorch coefficients.)
    coef = coef_ref[...] + c0                                          # (C, S) f32
    m = jnp.max(coef, axis=-1, keepdims=True)
    e = jnp.exp(coef - m)
    p = e * pl.reciprocal(jnp.sum(e, axis=-1, keepdims=True), approx=True)
    sem = jnp.dot(p.astype(xb_ref.dtype), xb_ref[...],
                  preferred_element_type=jnp.float32)                  # (C, D)
    out_ref[0] = sem.astype(out_ref.dtype)


def ssgrl_forward(feature_map_nchw, word_features, params):
    Bn, Cb, Hh, Ww = feature_map_nchw.shape
    Ss = Hh * Ww
    ew = _elementwise_dtype()

    # Channels-last feature map (B, S, CB): lane-dense (CB multiple of 128) and the
    # first matmul needs no transposed lhs. A real TPU backbone is NHWC already.
    fm = jnp.transpose(feature_map_nchw, (0, 2, 3, 1)).reshape(Bn, Ss, Cb)
    fm = fm.astype(jnp.bfloat16)

    hi = jax.lax.Precision.HIGHEST
    # ---- trace-time, batch-invariant folds (exact algebra, done in f32) ----
    wcc_bn = (params["wcc"] * params["bn_scale"]).astype(jnp.bfloat16)         # (CB, D)
    bnsh = params["bn_shift"].astype(jnp.float32)                              # (1, D)
    w1b = params["w1"].astype(jnp.bfloat16)                                    # (D, DM)
    word_i = jnp.dot(word_features, params["w2"], precision=hi).astype(ew)     # (C, DM)
    v = jnp.dot(params["w3"], params["w4"][0], precision=hi).reshape(1, DM).astype(ew)
    c0 = (jnp.dot(params["b3"][0], params["w4"][0], precision=hi)
          + params["b4"][0, 0]).reshape(1, 1).astype(jnp.float32)

    ew_bytes = jnp.dtype(ew).itemsize
    flops = Bn * (2 * Ss * Cb * D + 2 * Ss * D * DM
                  + 3 * C * Ss * DM + 2 * C * Ss * D + 5 * C * Ss)
    transcendentals = Bn * (C * Ss * DM + C * Ss)
    bytes_accessed = (Bn * Ss * Cb * 2 + Cb * D * 2 + D * 4 + D * DM * 2
                      + C * DM * ew_bytes + DM * ew_bytes + 4 + Bn * C * D * 4)

    def run(single_buffer_weights):
        def wspec(shape):
            idx = lambda b: (0,) * len(shape)
            if single_buffer_weights:
                # Batch-invariant weights: single-buffered (saves VMEM headroom,
                # matters at real dims on v7x's 64 MiB VMEM).
                return pl.BlockSpec(shape, idx, pipeline_mode=pl.Buffered(1))
            return pl.BlockSpec(shape, idx)

        out = pl.pallas_call(
            ssgrl_kernel,
            out_shape=jax.ShapeDtypeStruct((Bn, C, D), jnp.float32),
            grid_spec=pltpu.PrefetchScalarGridSpec(
                num_scalar_prefetch=0,
                grid=(Bn,),
                in_specs=[
                    pl.BlockSpec((1, Ss, Cb), lambda b: (b, 0, 0)),     # feature map
                    wspec((Cb, D)),                                     # conv*BN weight
                    wspec((1, D)),                                      # BN shift
                    wspec((D, DM)),                                     # fc1 weight
                    wspec((C, DM)),                                     # fc2(word)
                    wspec((1, DM)),                                     # fc3∘fc4 vector
                    pl.BlockSpec(memory_space=pltpu.MemorySpace.SMEM),  # fc3∘fc4 bias
                ],
                out_specs=pl.BlockSpec((1, C, D), lambda b: (b, 0, 0)),
                scratch_shapes=[
                    pltpu.VMEM((Ss, D), jnp.bfloat16),   # xb   (changeChannel output)
                    pltpu.VMEM((Ss, DM), ew),            # img  (fc1 output)
                    pltpu.VMEM((C, Ss), jnp.float32),    # coef (attention logits)
                ],
            ),
            compiler_params=pltpu.CompilerParams(
                dimension_semantics=("parallel",),
                vmem_limit_bytes=32 * 1024 * 1024),
            cost_estimate=pl.CostEstimate(flops=flops,
                                          transcendentals=transcendentals,
                                          bytes_accessed=bytes_accessed),
        )(fm, wcc_bn, bnsh, w1b, word_i, v, c0)
        return jax.block_until_ready(out)

    try:
        return run(single_buffer_weights=True)
    except Exception:
        # pipeline_mode=pl.Buffered(1) not accepted by this JAX build -> default
        # double-buffered weight blocks (identical results, slightly more VMEM).
        return run(single_buffer_weights=False)


def ssgrl_ref(feature_map_nchw, word_features, params):
    """Pure-JAX f32 reference of the same (un-folded) forward pass."""
    hi = jax.lax.Precision.HIGHEST
    fm = jnp.transpose(feature_map_nchw, (0, 2, 3, 1)).reshape(B, S, CB)
    x = jnp.einsum('bsc,cd->bsd', fm, params["wcc"], precision=hi)
    x = x * params["bn_scale"][None] + params["bn_shift"][None]               # (B,S,D)
    img_i = jnp.einsum('bsd,dm->bsm', x, params["w1"], precision=hi)          # (B,S,DM)
    word_i = jnp.einsum('cw,wm->cm', word_features, params["w2"], precision=hi)
    t = jnp.tanh(img_i[:, :, None, :] * word_i[None, None, :, :])             # (B,S,C,DM)
    feat = jnp.einsum('bscm,mn->bscn', t, params["w3"], precision=hi) + params["b3"][0]
    coef = jnp.sum(feat * params["w4"][0], axis=-1) + params["b4"][0, 0]      # (B,S,C)
    p = jax.nn.softmax(coef, axis=1)                                          # over spatial
    sem = jnp.einsum('bsc,bsd->bcd', p, x, precision=hi)                      # (B,C,D)
    return sem


def make_params(key):
    ks = jax.random.split(key, 12)
    gamma = 1.0 + 0.1 * jax.random.normal(ks[0], (D,), jnp.float32)
    beta = 0.1 * jax.random.normal(ks[1], (D,), jnp.float32)
    run_mean = 0.1 * jax.random.normal(ks[2], (D,), jnp.float32)
    run_var = 0.5 + jnp.abs(jax.random.normal(ks[3], (D,), jnp.float32))
    eps = 1e-5
    bn_scale = gamma / jnp.sqrt(run_var + eps)
    bn_shift = beta - run_mean * bn_scale
    params = {
        "wcc": 0.05 * jax.random.normal(ks[4], (CB, D), jnp.float32),
        "bn_scale": bn_scale.reshape(1, D),
        "bn_shift": bn_shift.reshape(1, D),
        "w1": 0.05 * jax.random.normal(ks[5], (D, DM), jnp.float32),
        "w2": 0.1 * jax.random.normal(ks[6], (DW, DM), jnp.float32),
        "w3": 0.05 * jax.random.normal(ks[7], (DM, DM), jnp.float32),
        "b3": 0.01 * jax.random.normal(ks[8], (1, DM), jnp.float32),
        "w4": 0.05 * jax.random.normal(ks[9], (1, DM), jnp.float32),
        "b4": 0.01 * jax.random.normal(ks[10], (1, 1), jnp.float32),
    }
    return params, ks[11]


if __name__ == "__main__":
    key = jax.random.PRNGKey(0)
    params, key = make_params(key)
    k_fm, k_word = jax.random.split(key)
    feature_map = jax.random.normal(k_fm, (B, CB, H, W), jnp.float32)   # backbone output (NCHW)
    word_features = 0.1 * jax.random.normal(k_word, (C, DW), jnp.float32)

    out = jax.block_until_ready(ssgrl_forward(feature_map, word_features, params))
    ref = ssgrl_ref(feature_map, word_features, params)

    assert out.shape == (B, C, D), out.shape
    assert bool(jnp.all(jnp.isfinite(out)))
    err = float(jnp.max(jnp.abs(out - ref)))
    assert jnp.allclose(out, ref, rtol=5e-2, atol=5e-2), err
    print("KERNEL_OK")
</pallas_src>

<mosaic_0001>
module attributes {stable_mosaic.version = 11 : i64} {
  func.func @ssgrl_kernel(%arg0: i32, %arg1: memref<1x16x256xbf16, #tpu.memory_space<vmem>>, %arg2: memref<256x128xbf16, #tpu.memory_space<vmem>>, %arg3: memref<1x128xf32, #tpu.memory_space<vmem>>, %arg4: memref<128x128xbf16, #tpu.memory_space<vmem>>, %arg5: memref<16x128xf32, #tpu.memory_space<vmem>>, %arg6: memref<1x128xf32, #tpu.memory_space<vmem>>, %arg7: memref<1x1xf32, #tpu.memory_space<smem>>, %arg8: memref<1x16x128xf32, #tpu.memory_space<vmem>>, %arg9: memref<16x128xbf16, #tpu.memory_space<vmem>>, %arg10: memref<16x128xf32, #tpu.memory_space<vmem>>, %arg11: memref<16x16xf32, #tpu.memory_space<vmem>>) attributes {dimension_semantics = [#tpu.dimension_semantics<parallel>], iteration_bounds = array<i64: 2>, scalar_prefetch = 0 : i64, scratch_operands = 3 : i64, tpu.core_type = #tpu.core_type<tc>, window_params = [{transform_indices = @transform_0, window_bounds = array<i64: 1, 16, 256>}, {pipeline_mode = #tpu.pipeline_mode<synchronous>, transform_indices = @transform_1, window_bounds = array<i64: 256, 128>}, {pipeline_mode = #tpu.pipeline_mode<synchronous>, transform_indices = @transform_2, window_bounds = array<i64: 1, 128>}, {pipeline_mode = #tpu.pipeline_mode<synchronous>, transform_indices = @transform_3, window_bounds = array<i64: 128, 128>}, {pipeline_mode = #tpu.pipeline_mode<synchronous>, transform_indices = @transform_4, window_bounds = array<i64: 16, 128>}, {pipeline_mode = #tpu.pipeline_mode<synchronous>, transform_indices = @transform_5, window_bounds = array<i64: 1, 128>}, {transform_indices = @transform_6, window_bounds = array<i64: 1, 1>}, {transform_indices = @transform_7, window_bounds = array<i64: 1, 16, 128>}]} {
    %c0 = arith.constant 0 : index
    %c0_0 = arith.constant 0 : index
    %c0_1 = arith.constant 0 : index
    %0 = vector.load %arg1[%c0, %c0_0, %c0_1] : memref<1x16x256xbf16, #tpu.memory_space<vmem>>, vector<1x16x256xbf16>
    %1 = vector.shape_cast %0 : vector<1x16x256xbf16> to vector<16x256xbf16>
    %c0_2 = arith.constant 0 : index
    %c0_3 = arith.constant 0 : index
    %2 = vector.load %arg2[%c0_2, %c0_3] : memref<256x128xbf16, #tpu.memory_space<vmem>>, vector<256x128xbf16>
    %cst = arith.constant dense<0.000000e+00> : vector<16x128xf32>
    %3 = tpu.matmul %1, %2, %cst {dimension_numbers = #tpu.dot_dimension_numbers<[1], [0], [0], [1], [0, 0, 1, 1], [], []>} : vector<16x256xbf16>, vector<256x128xbf16>, vector<16x128xf32> -> vector<16x128xf32>
    %c0_4 = arith.constant 0 : index
    %c0_5 = arith.constant 0 : index
    %4 = vector.load %arg3[%c0_4, %c0_5] : memref<1x128xf32, #tpu.memory_space<vmem>>, vector<1x128xf32>
    %5 = vector.broadcast %4 : vector<1x128xf32> to vector<16x128xf32>
    %6 = arith.addf %3, %5 : vector<16x128xf32>
    %7 = arith.truncf %6 : vector<16x128xf32> to vector<16x128xbf16>
    %c0_6 = arith.constant 0 : index
    %c0_7 = arith.constant 0 : index
    %8 = vector.load %arg9[%c0_6, %c0_7] : memref<16x128xbf16, #tpu.memory_space<vmem>>, vector<16x128xbf16>
    tpu.vector_store %arg9[%c0_6, %c0_7], %7 {strides = array<i32>} : memref<16x128xbf16, #tpu.memory_space<vmem>>, vector<16x128xbf16>,
    %c0_8 = arith.constant 0 : index
    %c0_9 = arith.constant 0 : index
    %9 = vector.load %arg9[%c0_8, %c0_9] : memref<16x128xbf16, #tpu.memory_space<vmem>>, vector<16x128xbf16>
    %c0_10 = arith.constant 0 : index
    %c0_11 = arith.constant 0 : index
    %10 = vector.load %arg4[%c0_10, %c0_11] : memref<128x128xbf16, #tpu.memory_space<vmem>>, vector<128x128xbf16>
    %cst_12 = arith.constant dense<0.000000e+00> : vector<16x128xf32>
    %11 = tpu.matmul %9, %10, %cst_12 {dimension_numbers = #tpu.dot_dimension_numbers<[1], [0], [0], [1], [0, 0, 1, 1], [], []>} : vector<16x128xbf16>, vector<128x128xbf16>, vector<16x128xf32> -> vector<16x128xf32>
    %c0_13 = arith.constant 0 : index
    %c0_14 = arith.constant 0 : index
    %12 = vector.load %arg10[%c0_13, %c0_14] : memref<16x128xf32, #tpu.memory_space<vmem>>, vector<16x128xf32>
    tpu.vector_store %arg10[%c0_13, %c0_14], %11 {strides = array<i32>} : memref<16x128xf32, #tpu.memory_space<vmem>>, vector<16x128xf32>,
    %c0_15 = arith.constant 0 : index
    %c0_16 = arith.constant 0 : index
    %13 = vector.load %arg6[%c0_15, %c0_16] : memref<1x128xf32, #tpu.memory_space<vmem>>, vector<1x128xf32>
    %c0_17 = arith.constant 0 : index
    %c0_18 = arith.constant 0 : index
    %14 = memref.load %arg7[%c0_17, %c0_18] : memref<1x1xf32, #tpu.memory_space<smem>>
    %c0_i32 = arith.constant 0 : i32
    %c16_i32 = arith.constant 16 : i32
    %15 = arith.addi %c0_i32, %c16_i32 : i32
    %c1_i32 = arith.constant 1 : i32
    scf.for %arg12 = %c0_i32 to %15 step %c1_i32  : i32 {
      %c1_i32_30 = arith.constant 1 : i32
      %35 = arith.muli %arg12, %c1_i32_30 : i32
      %c0_i32_31 = arith.constant 0 : i32
      %36 = arith.addi %c0_i32_31, %35 : i32
      %37 = arith.index_cast %36 : i32 to index
      %c0_32 = arith.constant 0 : index
      %38 = vector.load %arg5[%37, %c0_32] : memref<16x128xf32, #tpu.memory_space<vmem>>, vector<1x128xf32>
      %c0_33 = arith.constant 0 : index
      %c0_34 = arith.constant 0 : index
      %39 = vector.load %arg10[%c0_33, %c0_34] : memref<16x128xf32, #tpu.memory_space<vmem>>, vector<16x128xf32>
      %40 = vector.broadcast %38 : vector<1x128xf32> to vector<16x128xf32>
      %41 = arith.mulf %40, %39 : vector<16x128xf32>
      %42 = math.tanh %41 : vector<16x128xf32>
      %cst_35 = arith.constant dense<0.000000e+00> : vector<1x16xf32>
      %43 = tpu.matmul %13, %42, %cst_35 {dimension_numbers = #tpu.dot_dimension_numbers<[1], [1], [0], [0], [0, 0, 1, 0], [], []>} : vector<1x128xf32>, vector<16x128xf32>, vector<1x16xf32> -> vector<1x16xf32>
      %44 = arith.index_cast %36 : i32 to index
      %c0_36 = arith.constant 0 : index
      %45 = vector.load %arg11[%44, %c0_36] : memref<16x16xf32, #tpu.memory_space<vmem>>, vector<1x16xf32>
      tpu.vector_store %arg11[%44, %c0_36], %43 {strides = array<i32>} : memref<16x16xf32, #tpu.memory_space<vmem>>, vector<1x16xf32>,
    }
    %c16_i32_19 = arith.constant 16 : i32
    %c0_20 = arith.constant 0 : index
    %c0_21 = arith.constant 0 : index
    %16 = vector.load %arg11[%c0_20, %c0_21] : memref<16x16xf32, #tpu.memory_space<vmem>>, vector<16x16xf32>
    %17 = vector.broadcast %14 : f32 to vector<16x16xf32>
    %18 = arith.addf %16, %17 : vector<16x16xf32>
    %cst_22 = arith.constant dense<0xFF800000> : vector<16xf32>
    %19 = vector.multi_reduction <maximumf>, %18, %cst_22 [1] : vector<16x16xf32> to vector<16xf32>
    %20 = vector.shape_cast %19 : vector<16xf32> to vector<16x1xf32>
    %21 = vector.broadcast %20 : vector<16x1xf32> to vector<16x16xf32>
    %22 = arith.subf %18, %21 : vector<16x16xf32>
    %23 = math.exp %22 : vector<16x16xf32>
    %cst_23 = arith.constant dense<0.000000e+00> : vector<16xf32>
    %24 = vector.multi_reduction <add>, %23, %cst_23 [1] : vector<16x16xf32> to vector<16xf32>
    %25 = vector.shape_cast %24 : vector<16xf32> to vector<16x1xf32>
    %26 = tpu.reciprocal %25 {approx = true} : vector<16x1xf32> -> vector<16x1xf32>
    %27 = vector.broadcast %26 : vector<16x1xf32> to vector<16x16xf32>
    %28 = arith.mulf %23, %27 : vector<16x16xf32>
    %29 = arith.truncf %28 : vector<16x16xf32> to vector<16x16xbf16>
    %c0_24 = arith.constant 0 : index
    %c0_25 = arith.constant 0 : index
    %30 = vector.load %arg9[%c0_24, %c0_25] : memref<16x128xbf16, #tpu.memory_space<vmem>>, vector<16x128xbf16>
    %cst_26 = arith.constant dense<0.000000e+00> : vector<16x128xf32>
    %31 = tpu.matmul %29, %30, %cst_26 {dimension_numbers = #tpu.dot_dimension_numbers<[1], [0], [0], [1], [0, 0, 1, 1], [], []>} : vector<16x16xbf16>, vector<16x128xbf16>, vector<16x128xf32> -> vector<16x128xf32>
    %c0_27 = arith.constant 0 : index
    %c0_28 = arith.constant 0 : index
    %c0_29 = arith.constant 0 : index
    %32 = vector.load %arg8[%c0_27, %c0_28, %c0_29] : memref<1x16x128xf32, #tpu.memory_space<vmem>>, vector<1x16x128xf32>
    %33 = vector.shape_cast %32 : vector<1x16x128xf32> to vector<16x128xf32>
    %34 = vector.shape_cast %31 : vector<16x128xf32> to vector<1x16x128xf32>
    tpu.vector_store %arg8[%c0_27, %c0_28, %c0_29], %34 {strides = array<i32>} : memref<1x16x128xf32, #tpu.memory_space<vmem>>, vector<1x16x128xf32>,
    return
  }
  func.func @transform_0(%arg0: i32) -> (i32, i32, i32) {
    %c0_i32 = arith.constant 0 : i32
    %c0_i32_0 = arith.constant 0 : i32
    %c0_i32_1 = arith.constant 0 : i32
    return %arg0, %c0_i32, %c0_i32_0 : i32, i32, i32
  }
  func.func @transform_1(%arg0: i32) -> (i32, i32) {
    %c0_i32 = arith.constant 0 : i32
    %c0_i32_0 = arith.constant 0 : i32
    %c0_i32_1 = arith.constant 0 : i32
    return %c0_i32, %c0_i32_0 : i32, i32
  }
  func.func @transform_2(%arg0: i32) -> (i32, i32) {
    %c0_i32 = arith.constant 0 : i32
    %c0_i32_0 = arith.constant 0 : i32
    %c0_i32_1 = arith.constant 0 : i32
    return %c0_i32, %c0_i32_0 : i32, i32
  }
  func.func @transform_3(%arg0: i32) -> (i32, i32) {
    %c0_i32 = arith.constant 0 : i32
    %c0_i32_0 = arith.constant 0 : i32
    %c0_i32_1 = arith.constant 0 : i32
    return %c0_i32, %c0_i32_0 : i32, i32
  }
  func.func @transform_4(%arg0: i32) -> (i32, i32) {
    %c0_i32 = arith.constant 0 : i32
    %c0_i32_0 = arith.constant 0 : i32
    %c0_i32_1 = arith.constant 0 : i32
    return %c0_i32, %c0_i32_0 : i32, i32
  }
  func.func @transform_5(%arg0: i32) -> (i32, i32) {
    %c0_i32 = arith.constant 0 : i32
    %c0_i32_0 = arith.constant 0 : i32
    %c0_i32_1 = arith.constant 0 : i32
    return %c0_i32, %c0_i32_0 : i32, i32
  }
  func.func @transform_6(%arg0: i32) -> (i32, i32) {
    %c0_i32 = arith.constant 0 : i32
    %c0_i32_0 = arith.constant 0 : i32
    %c0_i32_1 = arith.constant 0 : i32
    return %c0_i32, %c0_i32_0 : i32, i32
  }
  func.func @transform_7(%arg0: i32) -> (i32, i32, i32) {
    %c0_i32 = arith.constant 0 : i32
    %c0_i32_0 = arith.constant 0 : i32
    %c0_i32_1 = arith.constant 0 : i32
    return %arg0, %c0_i32, %c0_i32_0 : i32, i32, i32
  }
}

module attributes {stable_mosaic.version = 11 : i64} {
  func.func @ssgrl_kernel(%arg0: i32, %arg1: memref<1x16x256xbf16, #tpu.memory_space<vmem>>, %arg2: memref<256x128xbf16, #tpu.memory_space<vmem>>, %arg3: memref<1x128xf32, #tpu.memory_space<vmem>>, %arg4: memref<128x128xbf16, #tpu.memory_space<vmem>>, %arg5: memref<16x128xf32, #tpu.memory_space<vmem>>, %arg6: memref<1x128xf32, #tpu.memory_space<vmem>>, %arg7: memref<1x1xf32, #tpu.memory_space<smem>>, %arg8: memref<1x16x128xf32, #tpu.memory_space<vmem>>, %arg9: memref<16x128xbf16, #tpu.memory_space<vmem>>, %arg10: memref<16x128xf32, #tpu.memory_space<vmem>>, %arg11: memref<16x16xf32, #tpu.memory_space<vmem>>) attributes {dimension_semantics = [#tpu.dimension_semantics<parallel>], iteration_bounds = array<i64: 2>, scalar_prefetch = 0 : i64, scratch_operands = 3 : i64, tpu.core_type = #tpu.core_type<tc>, window_params = [{transform_indices = @transform_0, window_bounds = array<i64: 1, 16, 256>}, {pipeline_mode = #tpu.pipeline_mode<synchronous>, transform_indices = @transform_1, window_bounds = array<i64: 256, 128>}, {pipeline_mode = #tpu.pipeline_mode<synchronous>, transform_indices = @transform_2, window_bounds = array<i64: 1, 128>}, {pipeline_mode = #tpu.pipeline_mode<synchronous>, transform_indices = @transform_3, window_bounds = array<i64: 128, 128>}, {pipeline_mode = #tpu.pipeline_mode<synchronous>, transform_indices = @transform_4, window_bounds = array<i64: 16, 128>}, {pipeline_mode = #tpu.pipeline_mode<synchronous>, transform_indices = @transform_5, window_bounds = array<i64: 1, 128>}, {transform_indices = @transform_6, window_bounds = array<i64: 1, 1>}, {transform_indices = @transform_7, window_bounds = array<i64: 1, 16, 128>}]} {
    %c0 = arith.constant 0 : index
    %c0_0 = arith.constant 0 : index
    %c0_1 = arith.constant 0 : index
    %0 = vector.load %arg1[%c0, %c0_0, %c0_1] : memref<1x16x256xbf16, #tpu.memory_space<vmem>>, vector<1x16x256xbf16>
    %1 = vector.shape_cast %0 : vector<1x16x256xbf16> to vector<16x256xbf16>
    %c0_2 = arith.constant 0 : index
    %c0_3 = arith.constant 0 : index
    %2 = vector.load %arg2[%c0_2, %c0_3] : memref<256x128xbf16, #tpu.memory_space<vmem>>, vector<256x128xbf16>
    %cst = arith.constant dense<0.000000e+00> : vector<16x128xf32>
    %3 = tpu.matmul %1, %2, %cst {dimension_numbers = #tpu.dot_dimension_numbers<[1], [0], [0], [1], [0, 0, 1, 1], [], []>} : vector<16x256xbf16>, vector<256x128xbf16>, vector<16x128xf32> -> vector<16x128xf32>
    %c0_4 = arith.constant 0 : index
    %c0_5 = arith.constant 0 : index
    %4 = vector.load %arg3[%c0_4, %c0_5] : memref<1x128xf32, #tpu.memory_space<vmem>>, vector<1x128xf32>
    %5 = vector.broadcast %4 : vector<1x128xf32> to vector<16x128xf32>
    %6 = arith.addf %3, %5 : vector<16x128xf32>
    %7 = arith.truncf %6 : vector<16x128xf32> to vector<16x128xbf16>
    %c0_6 = arith.constant 0 : index
    %c0_7 = arith.constant 0 : index
    %8 = vector.load %arg9[%c0_6, %c0_7] : memref<16x128xbf16, #tpu.memory_space<vmem>>, vector<16x128xbf16>
    tpu.vector_store %arg9[%c0_6, %c0_7], %7 {strides = array<i32>} : memref<16x128xbf16, #tpu.memory_space<vmem>>, vector<16x128xbf16>,
    %c0_8 = arith.constant 0 : index
    %c0_9 = arith.constant 0 : index
    %9 = vector.load %arg9[%c0_8, %c0_9] : memref<16x128xbf16, #tpu.memory_space<vmem>>, vector<16x128xbf16>
    %c0_10 = arith.constant 0 : index
    %c0_11 = arith.constant 0 : index
    %10 = vector.load %arg4[%c0_10, %c0_11] : memref<128x128xbf16, #tpu.memory_space<vmem>>, vector<128x128xbf16>
    %cst_12 = arith.constant dense<0.000000e+00> : vector<16x128xf32>
    %11 = tpu.matmul %9, %10, %cst_12 {dimension_numbers = #tpu.dot_dimension_numbers<[1], [0], [0], [1], [0, 0, 1, 1], [], []>} : vector<16x128xbf16>, vector<128x128xbf16>, vector<16x128xf32> -> vector<16x128xf32>
    %c0_13 = arith.constant 0 : index
    %c0_14 = arith.constant 0 : index
    %12 = vector.load %arg10[%c0_13, %c0_14] : memref<16x128xf32, #tpu.memory_space<vmem>>, vector<16x128xf32>
    tpu.vector_store %arg10[%c0_13, %c0_14], %11 {strides = array<i32>} : memref<16x128xf32, #tpu.memory_space<vmem>>, vector<16x128xf32>,
    %c0_15 = arith.constant 0 : index
    %c0_16 = arith.constant 0 : index
    %13 = vector.load %arg6[%c0_15, %c0_16] : memref<1x128xf32, #tpu.memory_space<vmem>>, vector<1x128xf32>
    %c0_17 = arith.constant 0 : index
    %c0_18 = arith.constant 0 : index
    %14 = memref.load %arg7[%c0_17, %c0_18] : memref<1x1xf32, #tpu.memory_space<smem>>
    %c0_i32 = arith.constant 0 : i32
    %c16_i32 = arith.constant 16 : i32
    %15 = arith.addi %c0_i32, %c16_i32 : i32
    %c1_i32 = arith.constant 1 : i32
    scf.for %arg12 = %c0_i32 to %15 step %c1_i32  : i32 {
      %c1_i32_30 = arith.constant 1 : i32
      %35 = arith.muli %arg12, %c1_i32_30 : i32
      %c0_i32_31 = arith.constant 0 : i32
      %36 = arith.addi %c0_i32_31, %35 : i32
      %37 = arith.index_cast %36 : i32 to index
      %c0_32 = arith.constant 0 : index
      %38 = vector.load %arg5[%37, %c0_32] : memref<16x128xf32, #tpu.memory_space<vmem>>, vector<1x128xf32>
      %c0_33 = arith.constant 0 : index
      %c0_34 = arith.constant 0 : index
      %39 = vector.load %arg10[%c0_33, %c0_34] : memref<16x128xf32, #tpu.memory_space<vmem>>, vector<16x128xf32>
      %40 = vector.broadcast %38 : vector<1x128xf32> to vector<16x128xf32>
      %41 = arith.mulf %40, %39 : vector<16x128xf32>
      %42 = math.tanh %41 : vector<16x128xf32>
      %cst_35 = arith.constant dense<0.000000e+00> : vector<1x16xf32>
      %43 = tpu.matmul %13, %42, %cst_35 {dimension_numbers = #tpu.dot_dimension_numbers<[1], [1], [0], [0], [0, 0, 1, 0], [], []>} : vector<1x128xf32>, vector<16x128xf32>, vector<1x16xf32> -> vector<1x16xf32>
      %44 = arith.index_cast %36 : i32 to index
      %c0_36 = arith.constant 0 : index
      %45 = vector.load %arg11[%44, %c0_36] : memref<16x16xf32, #tpu.memory_space<vmem>>, vector<1x16xf32>
      tpu.vector_store %arg11[%44, %c0_36], %43 {strides = array<i32>} : memref<16x16xf32, #tpu.memory_space<vmem>>, vector<1x16xf32>,
    }
    %c16_i32_19 = arith.constant 16 : i32
    %c0_20 = arith.constant 0 : index
    %c0_21 = arith.constant 0 : index
    %16 = vector.load %arg11[%c0_20, %c0_21] : memref<16x16xf32, #tpu.memory_space<vmem>>, vector<16x16xf32>
    %17 = vector.broadcast %14 : f32 to vector<16x16xf32>
    %18 = arith.addf %16, %17 : vector<16x16xf32>
    %cst_22 = arith.constant dense<0xFF800000> : vector<16xf32>
    %19 = vector.multi_reduction <maximumf>, %18, %cst_22 [1] : vector<16x16xf32> to vector<16xf32>
    %20 = vector.shape_cast %19 : vector<16xf32> to vector<16x1xf32>
    %21 = vector.broadcast %20 : vector<16x1xf32> to vector<16x16xf32>
    %22 = arith.subf %18, %21 : vector<16x16xf32>
    %23 = math.exp %22 : vector<16x16xf32>
    %cst_23 = arith.constant dense<0.000000e+00> : vector<16xf32>
    %24 = vector.multi_reduction <add>, %23, %cst_23 [1] : vector<16x16xf32> to vector<16xf32>
    %25 = vector.shape_cast %24 : vector<16xf32> to vector<16x1xf32>
    %26 = tpu.reciprocal %25 {approx = true} : vector<16x1xf32> -> vector<16x1xf32>
    %27 = vector.broadcast %26 : vector<16x1xf32> to vector<16x16xf32>
    %28 = arith.mulf %23, %27 : vector<16x16xf32>
    %29 = arith.truncf %28 : vector<16x16xf32> to vector<16x16xbf16>
    %c0_24 = arith.constant 0 : index
    %c0_25 = arith.constant 0 : index
    %30 = vector.load %arg9[%c0_24, %c0_25] : memref<16x128xbf16, #tpu.memory_space<vmem>>, vector<16x128xbf16>
    %cst_26 = arith.constant dense<0.000000e+00> : vector<16x128xf32>
    %31 = tpu.matmul %29, %30, %cst_26 {dimension_numbers = #tpu.dot_dimension_numbers<[1], [0], [0], [1], [0, 0, 1, 1], [], []>} : vector<16x16xbf16>, vector<16x128xbf16>, vector<16x128xf32> -> vector<16x128xf32>
    %c0_27 = arith.constant 0 : index
    %c0_28 = arith.constant 0 : index
    %c0_29 = arith.constant 0 : index
    %32 = vector.load %arg8[%c0_27, %c0_28, %c0_29] : memref<1x16x128xf32, #tpu.memory_space<vmem>>, vector<1x16x128xf32>
    %33 = vector.shape_cast %32 : vector<1x16x128xf32> to vector<16x128xf32>
    %34 = vector.shape_cast %31 : vector<16x128xf32> to vector<1x16x128xf32>
    tpu.vector_store %arg8[%c0_27, %c0_28, %c0_29], %34 {strides = array<i32>} : memref<1x16x128xf32, #tpu.memory_space<vmem>>, vector<1x16x128xf32>,
    return
  }
  func.func @transform_0(%arg0: i32) -> (i32, i32, i32) {
    %c0_i32 = arith.constant 0 : i32
    %c0_i32_0 = arith.constant 0 : i32
    %c0_i32_1 = arith.constant 0 : i32
    return %arg0, %c0_i32, %c0_i32_0 : i32, i32, i32
  }
  func.func @transform_1(%arg0: i32) -> (i32, i32) {
    %c0_i32 = arith.constant 0 : i32
    %c0_i32_0 = arith.constant 0 : i32
    %c0_i32_1 = arith.constant 0 : i32
    return %c0_i32, %c0_i32_0 : i32, i32
  }
  func.func @transform_2(%arg0: i32) -> (i32, i32) {
    %c0_i32 = arith.constant 0 : i32
    %c0_i32_0 = arith.constant 0 : i32
    %c0_i32_1 = arith.constant 0 : i32
    return %c0_i32, %c0_i32_0 : i32, i32
  }
  func.func @transform_3(%arg0: i32) -> (i32, i32) {
    %c0_i32 = arith.constant 0 : i32
    %c0_i32_0 = arith.constant 0 : i32
    %c0_i32_1 = arith.constant 0 : i32
    return %c0_i32, %c0_i32_0 : i32, i32
  }
  func.func @transform_4(%arg0: i32) -> (i32, i32) {
    %c0_i32 = arith.constant 0 : i32
    %c0_i32_0 = arith.constant 0 : i32
    %c0_i32_1 = arith.constant 0 : i32
    return %c0_i32, %c0_i32_0 : i32, i32
  }
  func.func @transform_5(%arg0: i32) -> (i32, i32) {
    %c0_i32 = arith.constant 0 : i32
    %c0_i32_0 = arith.constant 0 : i32
    %c0_i32_1 = arith.constant 0 : i32
    return %c0_i32, %c0_i32_0 : i32, i32
  }
  func.func @transform_6(%arg0: i32) -> (i32, i32) {
    %c0_i32 = arith.constant 0 : i32
    %c0_i32_0 = arith.constant 0 : i32
    %c0_i32_1 = arith.constant 0 : i32
    return %c0_i32, %c0_i32_0 : i32, i32
  }
  func.func @transform_7(%arg0: i32) -> (i32, i32, i32) {
    %c0_i32 = arith.constant 0 : i32
    %c0_i32_0 = arith.constant 0 : i32
    %c0_i32_1 = arith.constant 0 : i32
    return %arg0, %c0_i32, %c0_i32_0 : i32, i32, i32
  }
}

</mosaic_0001>

<llo_original>
// kernel: tpu_custom_call.1
$region0: #{tpu_custom_call.1}
  #allocation0 [shape = 'u32[]', space=smem, size = 0x4, offset = 0x4, fixed_abs, tag = 'smem constant byte address 0x4 - core index']
  #allocation1 [shape = 'u32[144,128]{1,0:T(1,128)}', space=vmem, size = 0x12000, scoped, tag = 'internal scratch']
  #allocation2 [shape = 'bf16[16,128]{1,0:T(16,128)(2,1)}', space=vmem, size = 0x1000, scoped, tag = 'scratch operand']
  #allocation3 [shape = 'f32[16,128]{1,0:T(8,128)}', space=vmem, size = 0x2000, scoped, tag = 'scratch operand']
  #allocation4 [shape = 'f32[16,16]{1,0:T(8,128)}', space=vmem, size = 0x2000, scoped, tag = 'scratch operand']
  #allocation5 [shape = 'f32[1,1]{1,0:T(1,128)S(6)}', space=smem, size = 0x200, scoped, tag = 'scoped memory for tpu_custom_call.1']
  %s0 = inlined_call_operand.hbm [shape: bf16[2,16,256], index: 0, kind: input, shape index: {}]
  %s1 = inlined_call_operand.hbm [shape: bf16[256,128], index: 1, kind: input, shape index: {}]
  %s2 = inlined_call_operand.vmem [shape: f32[1,128], index: 2, kind: input, shape index: {}]
  %s3 = inlined_call_operand.hbm [shape: bf16[128,128], index: 3, kind: input, shape index: {}]
  %s4 = inlined_call_operand.vmem [shape: f32[16,128], index: 4, kind: input, shape index: {}]
  %s5 = inlined_call_operand.vmem [shape: f32[1,128], index: 5, kind: input, shape index: {}]
  %s6 = inlined_call_operand.<no memory space> [shape: f32[1,1], index: 6, kind: input, shape index: {}]
  %s7 = inlined_call_operand.hbm [shape: f32[2,16,128], index: 7, kind: output, shape index: {}]
  %s8 = sld [smem:[#allocation0]]
  $region80: #{tpu_custom_call.1} parent=0
    _
  %s10 = ssub.s32 1, %s8
  %s11 = scalar_select 0, %s10, %s8
  %12 = sst [smem:[#allocation5]] %s6
  $region1: #{tpu_custom_call.1} parent=0
    #allocation6 [shape = 'u8[16384]{0}', space=vmem, size = 0x4000, scoped, tag = 'input window, operand 0']
    #allocation7 [shape = 's32[2]{0}', space=sflag, size = 0x8, scoped, tag = 'scoped memory for tpu_custom_call.1']
    #allocation8 [shape = 's32[2]{0}', space=sflag, size = 0x8, scoped, tag = 'scoped memory for tpu_custom_call.1']
    #allocation9 [shape = 'u8[65536]{0}', space=vmem, size = 0x10000, scoped, tag = 'input window, operand 1, single buffered']
    #allocation10 [shape = 's32[1]{0}', space=sflag, size = 0x4, scoped, tag = 'scoped memory for tpu_custom_call.1']
    #allocation11 [shape = 'u8[32768]{0}', space=vmem, size = 0x8000, scoped, tag = 'input window, operand 3, single buffered']
    #allocation12 [shape = 'u8[16384]{0}', space=vmem, size = 0x4000, scoped, tag = 'output window, operand 0']
    %13 = vsyncpa [#allocation7], 0
    %s14 = scalar_lea.sflag [#allocation7], 1
    %15 = vsyncpa %s14, 0
    %16 = vsyncpa [#allocation10], 0
    %17 = vsyncpa [#allocation8], 0
    %s18 = scalar_lea.sflag [#allocation8], 1
    %19 = vsyncpa %s18, 0
    loop: start=0, step=1, limit=4
    $region2: #{tpu_custom_call.1} parent=1 // loop_pre_header
      _
    $region3: #{tpu_custom_call.1} parent=1 // loop_header
      %s21 = sphi 0, %s25
      %p22 = scmp.ge.s32.totalorder %s21, 4
      %s31 = sphi 0, %s33
      %s34 = sphi 0, %s31
      %s35 = sphi 0, %s34
      %s51 = sphi 0, %s35
      %s55 = sphi 0, %s55
      %s57 = sphi 0, %s55
      %s58 = sphi 0, %s57
      %s72 = sphi 0, %s58
      %s76 = sphi 0, %s76
      %s78 = sphi 0, %s76
      %s79 = sphi 0, %s78
      %s93 = sphi 0, %s79
      %s97 = sphi 0, %s97
      %s99 = sphi 0, %s97
      %s100 = sphi 0, %s99
      %s114 = sphi 0, %s100
      %s118 = sphi 0, %s118
      %s120 = sphi 0, %s118
      %s121 = sphi 0, %s120
      %s135 = sphi 0, %s121
      %s139 = sphi 0, %s139
      %s141 = sphi 0, %s139
      %s142 = sphi 0, %s141
      %s156 = sphi 0, %s142
      %s160 = sphi 0, %s160
      %s162 = sphi 0, %s160
      %s163 = sphi 0, %s162
      %s177 = sphi 0, %s163
      %s183 = sphi 0, %s185
      %s186 = sphi 0, %s183
      %s187 = sphi 0, %s186
      %s203 = sphi 0, %s187
    $region4: #{tpu_custom_call.1} parent=1 // loop_header_branch
      %24 = sbr.rel (%p22) target = $region8
    $region5: #{tpu_custom_call.1} parent=1 // loop_body
      %s26 = ssub.s32 %s21, 1
      %s27 = ssub.s32 %s21, 2
      %s28 = sadd.s32 %s21, 1
      %s29 = ssub.s32 %s21, %s28
      %p30 = scmp.eq.s32.totalorder %s29, 0
      %s32 = sadd.s32 %s31, 1
      %s33 = scalar_select %p30, %s31, %s32
      %p36 = pneg %p30
      %p37 = scmp.eq.s32.totalorder %s21, 1
      %p38 = por %p36, %p37
      %p39 = scmp.ne.s32.totalorder %s31, %s34
      %p40 = scmp.eq.s32.totalorder %s21, 0
      %p41 = por %p39, %p40
      %p42 = scmp.ne.s32.totalorder %s31, %s34
      %p43 = scmp.eq.s32.totalorder %s26, 1
      %p44 = por %p42, %p43
      %p45 = scmp.ne.s32.totalorder %s34, %s35
      %p46 = scmp.eq.s32.totalorder %s26, 0
      %p47 = por %p45, %p46
      %p48 = scmp.ne.s32.totalorder %s34, %s35
      %p49 = scmp.eq.s32.totalorder %s27, 1
      %p50 = por %p48, %p49
      %p52 = scmp.ne.s32.totalorder %s35, %s51
      %p53 = scmp.eq.s32.totalorder %s27, 0
      %p54 = por %p52, %p53
      %s56 = sadd.s32 %s55, 1
      %p59 = scmp.eq.s32.totalorder %s21, 1
      %p60 = scmp.ne.s32.totalorder %s55, %s57
      %p61 = scmp.eq.s32.totalorder %s21, 0
      %p62 = por %p60, %p61
      %p63 = scmp.ne.s32.totalorder %s55, %s57
      %p64 = scmp.eq.s32.totalorder %s26, 1
      %p65 = por %p63, %p64
      %p66 = scmp.ne.s32.totalorder %s57, %s58
      %p67 = scmp.eq.s32.totalorder %s26, 0
      %p68 = por %p66, %p67
      %p69 = scmp.ne.s32.totalorder %s57, %s58
      %p70 = scmp.eq.s32.totalorder %s27, 1
      %p71 = por %p69, %p70
      %p73 = scmp.ne.s32.totalorder %s58, %s72
      %p74 = scmp.eq.s32.totalorder %s27, 0
      %p75 = por %p73, %p74
      %s77 = sadd.s32 %s76, 1
      %p80 = scmp.eq.s32.totalorder %s21, 1
      %p81 = scmp.ne.s32.totalorder %s76, %s78
      %p82 = scmp.eq.s32.totalorder %s21, 0
      %p83 = por %p81, %p82
      %p84 = scmp.ne.s32.totalorder %s76, %s78
      %p85 = scmp.eq.s32.totalorder %s26, 1
      %p86 = por %p84, %p85
      %p87 = scmp.ne.s32.totalorder %s78, %s79
      %p88 = scmp.eq.s32.totalorder %s26, 0
      %p89 = por %p87, %p88
      %p90 = scmp.ne.s32.totalorder %s78, %s79
      %p91 = scmp.eq.s32.totalorder %s27, 1
      %p92 = por %p90, %p91
      %p94 = scmp.ne.s32.totalorder %s79, %s93
      %p95 = scmp.eq.s32.totalorder %s27, 0
      %p96 = por %p94, %p95
      %s98 = sadd.s32 %s97, 1
      %p101 = scmp.eq.s32.totalorder %s21, 1
      %p102 = scmp.ne.s32.totalorder %s97, %s99
      %p103 = scmp.eq.s32.totalorder %s21, 0
      %p104 = por %p102, %p103
      %p105 = scmp.ne.s32.totalorder %s97, %s99
      %p106 = scmp.eq.s32.totalorder %s26, 1
      %p107 = por %p105, %p106
      %p108 = scmp.ne.s32.totalorder %s99, %s100
      %p109 = scmp.eq.s32.totalorder %s26, 0
      %p110 = por %p108, %p109
      %p111 = scmp.ne.s32.totalorder %s99, %s100
      %p112 = scmp.eq.s32.totalorder %s27, 1
      %p113 = por %p111, %p112
      %p115 = scmp.ne.s32.totalorder %s100, %s114
      %p116 = scmp.eq.s32.totalorder %s27, 0
      %p117 = por %p115, %p116
      %s119 = sadd.s32 %s118, 1
      %p122 = scmp.eq.s32.totalorder %s21, 1
      %p123 = scmp.ne.s32.totalorder %s118, %s120
      %p124 = scmp.eq.s32.totalorder %s21, 0
      %p125 = por %p123, %p124
      %p126 = scmp.ne.s32.totalorder %s118, %s120
      %p127 = scmp.eq.s32.totalorder %s26, 1
      %p128 = por %p126, %p127
      %p129 = scmp.ne.s32.totalorder %s120, %s121
      %p130 = scmp.eq.s32.totalorder %s26, 0
      %p131 = por %p129, %p130
      %p132 = scmp.ne.s32.totalorder %s120, %s121
      %p133 = scmp.eq.s32.totalorder %s27, 1
      %p134 = por %p132, %p133
      %p136 = scmp.ne.s32.totalorder %s121, %s135
      %p137 = scmp.eq.s32.totalorder %s27, 0
      %p138 = por %p136, %p137
      %s140 = sadd.s32 %s139, 1
      %p143 = scmp.eq.s32.totalorder %s21, 1
      %p144 = scmp.ne.s32.totalorder %s139, %s141
      %p145 = scmp.eq.s32.totalorder %s21, 0
      %p146 = por %p144, %p145
      %p147 = scmp.ne.s32.totalorder %s139, %s141
      %p148 = scmp.eq.s32.totalorder %s26, 1
      %p149 = por %p147, %p148
      %p150 = scmp.ne.s32.totalorder %s141, %s142
      %p151 = scmp.eq.s32.totalorder %s26, 0
      %p152 = por %p150, %p151
      %p153 = scmp.ne.s32.totalorder %s141, %s142
      %p154 = scmp.eq.s32.totalorder %s27, 1
      %p155 = por %p153, %p154
      %p157 = scmp.ne.s32.totalorder %s142, %s156
      %p158 = scmp.eq.s32.totalorder %s27, 0
      %p159 = por %p157, %p158
      %s161 = sadd.s32 %s160, 1
      %p164 = scmp.eq.s32.totalorder %s21, 1
      %p165 = scmp.ne.s32.totalorder %s160, %s162
      %p166 = scmp.eq.s32.totalorder %s21, 0
      %p167 = por %p165, %p166
      %p168 = scmp.ne.s32.totalorder %s160, %s162
      %p169 = scmp.eq.s32.totalorder %s26, 1
      %p170 = por %p168, %p169
      %p171 = scmp.ne.s32.totalorder %s162, %s163
      %p172 = scmp.eq.s32.totalorder %s26, 0
      %p173 = por %p171, %p172
      %p174 = scmp.ne.s32.totalorder %s162, %s163
      %p175 = scmp.eq.s32.totalorder %s27, 1
      %p176 = por %p174, %p175
      %p178 = scmp.ne.s32.totalorder %s163, %s177
      %p179 = scmp.eq.s32.totalorder %s27, 0
      %p180 = por %p178, %p179
      %s181 = ssub.s32 %s21, %s28
      %p182 = scmp.eq.s32.totalorder %s181, 0
      %s184 = sadd.s32 %s183, 1
      %s185 = scalar_select %p182, %s183, %s184
      %p188 = pneg %p182
      %p189 = scmp.eq.s32.totalorder %s21, 1
      %p190 = por %p188, %p189
      %p191 = scmp.ne.s32.totalorder %s183, %s186
      %p192 = scmp.eq.s32.totalorder %s21, 0
      %p193 = por %p191, %p192
      %p194 = scmp.ne.s32.totalorder %s183, %s186
      %p195 = scmp.eq.s32.totalorder %s26, 1
      %p196 = por %p194, %p195
      %p197 = scmp.ne.s32.totalorder %s186, %s187
      %p198 = scmp.eq.s32.totalorder %s26, 0
      %p199 = por %p197, %p198
      %p200 = scmp.ne.s32.totalorder %s186, %s187
      %p201 = scmp.eq.s32.totalorder %s27, 1
      %p202 = por %p200, %p201
      %p204 = scmp.ne.s32.totalorder %s187, %s203
      %p205 = scmp.eq.s32.totalorder %s27, 0
      %p206 = por %p204, %p205
      %p207 = scmp.le.s32.totalorder 1, %s21
      %p208 = scmp.lt.s32.totalorder %s21, 3
      %p209 = pnand %p207, %p208
      %p210 = pneg %p209
      // Predicated region
      $region9: #{tpu_custom_call.1} parent=5 // pred_check
        _
      $region10: #{tpu_custom_call.1} parent=5 // pred_check_branch
        %212 = sbr.rel (%p209) target = $region12
      $region11: #{tpu_custom_call.1} parent=5 // pred_region
        %s213 = ssub.s32 %s21, 1
        // Predicated region
        $region13: #{tpu_custom_call.1} parent=11 // pred_check
          %p214 = pneg %p68
        $region14: #{tpu_custom_call.1} parent=11 // pred_check_branch
          %216 = sbr.rel (%p214) target = $region16
        $region15: #{tpu_custom_call.1} parent=11 // pred_region
          %s218 = ssub.s32 2048, 2048
          %219 = vsyncadd [#allocation10], %s218
          %s220 = sshll.u32 [#allocation9], 4
          %s221 = int_to_ptr.vmem [resolvable:$true] %s220
          %226 = dma.hbm_to_vmem [thread:$0]  %s1, 2048, %s221, [#allocation10], 64, 64, 4
        $region16: #{tpu_custom_call.1} parent=11 // pred_fallthru
          _
        // Predicated region
        $region17: #{tpu_custom_call.1} parent=11 // pred_check
          %p227 = pneg %p89
        $region18: #{tpu_custom_call.1} parent=11 // pred_check_branch
          %229 = sbr.rel (%p227) target = $region20
        $region19: #{tpu_custom_call.1} parent=11 // pred_region
          _
        $region20: #{tpu_custom_call.1} parent=11 // pred_fallthru
          _
        // Predicated region
        $region21: #{tpu_custom_call.1} parent=11 // pred_check
          %p230 = pneg %p110
        $region22: #{tpu_custom_call.1} parent=11 // pred_check_branch
          %232 = sbr.rel (%p230) target = $region24
        $region23: #{tpu_custom_call.1} parent=11 // pred_region
          %s234 = ssub.s32 1024, 1024
          %235 = vsyncadd [#allocation10], %s234
          %s236 = sshll.u32 [#allocation11], 4
          %s237 = int_to_ptr.vmem [resolvable:$true] %s236
          %242 = dma.hbm_to_vmem [thread:$0]  %s3, 1024, %s237, [#allocation10], 64, 64, 4
        $region24: #{tpu_custom_call.1} parent=11 // pred_fallthru
          _
        // Predicated region
        $region25: #{tpu_custom_call.1} parent=11 // pred_check
          %p243 = pneg %p131
        $region26: #{tpu_custom_call.1} parent=11 // pred_check_branch
          %245 = sbr.rel (%p243) target = $region28
        $region27: #{tpu_custom_call.1} parent=11 // pred_region
          _
        $region28: #{tpu_custom_call.1} parent=11 // pred_fallthru
          _
        // Predicated region
        $region29: #{tpu_custom_call.1} parent=11 // pred_check
          %p246 = pneg %p152
        $region30: #{tpu_custom_call.1} parent=11 // pred_check_branch
          %248 = sbr.rel (%p246) target = $region32
        $region31: #{tpu_custom_call.1} parent=11 // pred_region
          _
        $region32: #{tpu_custom_call.1} parent=11 // pred_fallthru
          _
        // Predicated region
        $region33: #{tpu_custom_call.1} parent=11 // pred_check
          %p249 = pneg %p173
        $region34: #{tpu_custom_call.1} parent=11 // pred_check_branch
          %251 = sbr.rel (%p249) target = $region36
        $region35: #{tpu_custom_call.1} parent=11 // pred_region
          _
        $region36: #{tpu_custom_call.1} parent=11 // pred_fallthru
          _
      $region12: #{tpu_custom_call.1} parent=5 // pred_fallthru
        _
      %p252 = scmp.lt.s32.totalorder %s21, 2
      // Predicated region
      $region37: #{tpu_custom_call.1} parent=5 // pred_check
        %p253 = pneg %p252
      $region38: #{tpu_custom_call.1} parent=5 // pred_check_branch
        %255 = sbr.rel (%p253) target = $region40
      $region39: #{tpu_custom_call.1} parent=5 // pred_region
        // Predicated region
        $region41: #{tpu_custom_call.1} parent=39 // pred_check
          %p256 = pneg %p41
        $region42: #{tpu_custom_call.1} parent=39 // pred_check_branch
          %258 = sbr.rel (%p256) target = $region44
        $region43: #{tpu_custom_call.1} parent=39 // pred_region
          %s259 = sand.u32 %s31, 1
          %s260 = scalar_lea.sflag [#allocation7], %s259
          %s261 = sand.u32 %s31, 1
          %s262 = smul.addr %s261, 16
          %s263 = scalar_lea.vmem [#allocation6], %s262
          %s265 = ssub.s32 256, 256
          %266 = vsyncadd %s260, %s265
          %s267 = smul.addr %s21, 4
          %s268 = smul.addr %s267, 64
          %s269 = scalar_lea.hbm %s0, %s268
          %s270 = sshll.u32 %s263, 4
          %s271 = int_to_ptr.vmem [resolvable:$true] %s270
          %276 = dma.hbm_to_vmem [thread:$0]  %s269, 256, %s271, %s260, 128, 128, 8
        $region44: #{tpu_custom_call.1} parent=39 // pred_fallthru
          _
      $region40: #{tpu_custom_call.1} parent=5 // pred_fallthru
        _
      %p277 = scmp.le.s32.totalorder 1, %s21
      %p278 = scmp.lt.s32.totalorder %s21, 3
      %p279 = pnand %p277, %p278
      %p280 = pneg %p279
      // Predicated region
      $region45: #{tpu_custom_call.1} parent=5 // pred_check
        _
      $region46: #{tpu_custom_call.1} parent=5 // pred_check_branch
        %282 = sbr.rel (%p279) target = $region48
      $region47: #{tpu_custom_call.1} parent=5 // pred_region
        %s283 = ssub.s32 %s21, 1
        %s284 = sand.u32 %s34, 1
        %s285 = scalar_lea.sflag [#allocation7], %s284
        %s286 = sand.u32 %s34, 1
        %s287 = smul.addr %s286, 16
        %s288 = scalar_lea.vmem [#allocation6], %s287
        // Predicated region
        $region49: #{tpu_custom_call.1} parent=47 // pred_check
          %p289 = pneg %p47
        $region50: #{tpu_custom_call.1} parent=47 // pred_check_branch
          %291 = sbr.rel (%p289) target = $region52
        $region51: #{tpu_custom_call.1} parent=47 // pred_region
          %292 = dma.done %s285, 256
        $region52: #{tpu_custom_call.1} parent=47 // pred_fallthru
          _
        // Predicated region
        $region53: #{tpu_custom_call.1} parent=47 // pred_check
          %p293 = pneg %p68
        $region54: #{tpu_custom_call.1} parent=47 // pred_check_branch
          %295 = sbr.rel (%p293) target = $region56
        $region55: #{tpu_custom_call.1} parent=47 // pred_region
          %296 = dma.done [#allocation10], 2048
        $region56: #{tpu_custom_call.1} parent=47 // pred_fallthru
          _
        // Predicated region
        $region57: #{tpu_custom_call.1} parent=47 // pred_check
          %p297 = pneg %p110
        $region58: #{tpu_custom_call.1} parent=47 // pred_check_branch
          %299 = sbr.rel (%p297) target = $region60
        $region59: #{tpu_custom_call.1} parent=47 // pred_region
          %300 = dma.done [#allocation10], 1024
        $region60: #{tpu_custom_call.1} parent=47 // pred_fallthru
          _
        %s301 = sand.u32 %s34, 1
        %s302 = scalar_lea.sflag [#allocation7], %s301
        %s303 = sand.u32 %s34, 1
        %s304 = smul.addr %s303, 16
        %s305 = scalar_lea.vmem [#allocation6], %s304
        %p306 = pneg %p47
        %p307 = pneg %p44
        %p308 = pneg %p68
        %p309 = pneg %p65
        %p310 = pneg %p89
        %p311 = pneg %p86
        %p312 = pneg %p110
        %p313 = pneg %p107
        %p314 = pneg %p131
        %p315 = pneg %p128
        %p316 = pneg %p152
        %p317 = pneg %p149
        %p318 = pneg %p173
        %p319 = pneg %p170
        %p320 = pneg %p199
        %p321 = pneg %p196
        %s322 = sand.u32 %s186, 1
        %s323 = scalar_lea.sflag [#allocation8], %s322
        %s324 = sand.u32 %s186, 1
        %s325 = smul.addr %s324, 16
        %s326 = scalar_lea.vmem [#allocation12], %s325
        %v328 = vld [vmem:[%s288] sm:$0xff]
        %v329 = vld [vmem:[%s288 + $0x8] sm:$0xff]
        %v330 = vld [vmem:[#allocation9] sm:$0xf]
        %v331 = vld [vmem:[#allocation9 + $0x4] sm:$0xf]
        %v332 = vld [vmem:[#allocation9 + $0x8] sm:$0xf]
        %v333 = vld [vmem:[#allocation9 + $0xc] sm:$0xf]
        %v334 = vld [vmem:[#allocation9 + $0x10] sm:$0xf]
        %v335 = vld [vmem:[#allocation9 + $0x14] sm:$0xf]
        %v336 = vld [vmem:[#allocation9 + $0x18] sm:$0xf]
        %v337 = vld [vmem:[#allocation9 + $0x1c] sm:$0xf]
        %v338 = vld [vmem:[#allocation9 + $0x20] sm:$0xf]
        %v339 = vld [vmem:[#allocation9 + $0x24] sm:$0xf]
        %v340 = vld [vmem:[#allocation9 + $0x28] sm:$0xf]
        %v341 = vld [vmem:[#allocation9 + $0x2c] sm:$0xf]
        %v342 = vld [vmem:[#allocation9 + $0x30] sm:$0xf]
        %v343 = vld [vmem:[#allocation9 + $0x34] sm:$0xf]
        %v344 = vld [vmem:[#allocation9 + $0x38] sm:$0xf]
        %v345 = vld [vmem:[#allocation9 + $0x3c] sm:$0xf]
        %v346 = vld [vmem:[#allocation9 + $0x40] sm:$0xf]
        %v347 = vld [vmem:[#allocation9 + $0x44] sm:$0xf]
        %v348 = vld [vmem:[#allocation9 + $0x48] sm:$0xf]
        %v349 = vld [vmem:[#allocation9 + $0x4c] sm:$0xf]
        %v350 = vld [vmem:[#allocation9 + $0x50] sm:$0xf]
        %v351 = vld [vmem:[#allocation9 + $0x54] sm:$0xf]
        %v352 = vld [vmem:[#allocation9 + $0x58] sm:$0xf]
        %v353 = vld [vmem:[#allocation9 + $0x5c] sm:$0xf]
        %v354 = vld [vmem:[#allocation9 + $0x60] sm:$0xf]
        %v355 = vld [vmem:[#allocation9 + $0x64] sm:$0xf]
        %v356 = vld [vmem:[#allocation9 + $0x68] sm:$0xf]
        %v357 = vld [vmem:[#allocation9 + $0x6c] sm:$0xf]
        %v358 = vld [vmem:[#allocation9 + $0x70] sm:$0xf]
        %v359 = vld [vmem:[#allocation9 + $0x74] sm:$0xf]
        %v360 = vld [vmem:[#allocation9 + $0x78] sm:$0xf]
        %v361 = vld [vmem:[#allocation9 + $0x7c] sm:$0xf]
        %v362 = vld [vmem:[%s2] sm:$0x1]
        %v364 = vlaneseq
        %v365 = vshrl.u32 %v364, 7
        %v366 = vsub.s32 0, %v365
        %v367 = vrot.slane %v362, %v366
        %v371 = vunpack.c.l.b16 %v328
        %v372 = vunpack.c.h.b16 %v328
        %v373 = vunpack.c.l.b16 %v329
        %v374 = vunpack.c.h.b16 %v329
        %v375 = vpack.c.b16 %v373, %v371
        %v376 = vpack.c.b16 %v374, %v372
        %v411 = vunpack.c.l.b16 %v330
        %v412 = vunpack.c.l.b16 %v331
        %v413 = vunpack.c.l.b16 %v332
        %v414 = vunpack.c.l.b16 %v333
        %v415 = vunpack.c.l.b16 %v334
        %v416 = vunpack.c.l.b16 %v335
        %v417 = vunpack.c.l.b16 %v336
        %v418 = vunpack.c.l.b16 %v337
        %v419 = vunpack.c.l.b16 %v338
        %v420 = vunpack.c.l.b16 %v339
        %v421 = vunpack.c.l.b16 %v340
        %v422 = vunpack.c.l.b16 %v341
        %v423 = vunpack.c.l.b16 %v342
        %v424 = vunpack.c.l.b16 %v343
        %v425 = vunpack.c.l.b16 %v344
        %v426 = vunpack.c.l.b16 %v345
        %v427 = vunpack.c.l.b16 %v346
        %v428 = vunpack.c.l.b16 %v347
        %v429 = vunpack.c.l.b16 %v348
        %v430 = vunpack.c.l.b16 %v349
        %v431 = vunpack.c.l.b16 %v350
        %v432 = vunpack.c.l.b16 %v351
        %v433 = vunpack.c.l.b16 %v352
        %v434 = vunpack.c.l.b16 %v353
        %v435 = vunpack.c.l.b16 %v354
        %v436 = vunpack.c.l.b16 %v355
        %v437 = vunpack.c.l.b16 %v356
        %v438 = vunpack.c.l.b16 %v357
        %v439 = vunpack.c.l.b16 %v358
        %v440 = vunpack.c.l.b16 %v359
        %v441 = vunpack.c.l.b16 %v360
        %v442 = vunpack.c.l.b16 %v361
        %v443 = vpack.c.b16 %v412, %v411
        %v444 = vpack.c.b16 %v414, %v413
        %v445 = vpack.c.b16 %v416, %v415
        %v446 = vpack.c.b16 %v418, %v417
        %v447 = vpack.c.b16 %v420, %v419
        %v448 = vpack.c.b16 %v422, %v421
        %v449 = vpack.c.b16 %v424, %v423
        %v450 = vpack.c.b16 %v426, %v425
        %v451 = vpack.c.b16 %v428, %v427
        %v452 = vpack.c.b16 %v430, %v429
        %v453 = vpack.c.b16 %v432, %v431
        %v454 = vpack.c.b16 %v434, %v433
        %v455 = vpack.c.b16 %v436, %v435
        %v456 = vpack.c.b16 %v438, %v437
        %v457 = vpack.c.b16 %v440, %v439
        %v458 = vpack.c.b16 %v442, %v441
        %475 = vmatprep.subr.bf16.mxu0 0
        %476 = vmatpush1.bf16.msra.mxu0 %v443
        %477 = vmatprep.subr.bf16.mxu0 0
        %478 = vmatpush1.bf16.msra.mxu0 %v444
        %479 = vmatprep.subr.bf16.mxu0 0
        %480 = vmatpush1.bf16.msra.mxu0 %v445
        %481 = vmatprep.subr.bf16.mxu0 0
        %482 = vmatpush1.bf16.msra.mxu0 %v446
        %483 = vmatprep.subr.bf16.mxu0 0
        %484 = vmatpush1.bf16.msra.mxu0 %v447
        %485 = vmatprep.subr.bf16.mxu0 0
        %486 = vmatpush1.bf16.msra.mxu0 %v448
        %487 = vmatprep.subr.bf16.mxu0 0
        %488 = vmatpush1.bf16.msra.mxu0 %v449
        %489 = vmatprep.subr.bf16.mxu0 0
        %490 = vmatpush1.bf16.msra.mxu0 %v450
        %491 = vmatprep.subr.bf16.mxu0 0
        %492 = vmatpush1.bf16.msra.mxu0 %v451
        %493 = vmatprep.subr.bf16.mxu0 0
        %494 = vmatpush1.bf16.msra.mxu0 %v452
        %495 = vmatprep.subr.bf16.mxu0 0
        %496 = vmatpush1.bf16.msra.mxu0 %v453
        %497 = vmatprep.subr.bf16.mxu0 0
        %498 = vmatpush1.bf16.msra.mxu0 %v454
        %499 = vmatprep.subr.bf16.mxu0 0
        %500 = vmatpush1.bf16.msra.mxu0 %v455
        %501 = vmatprep.subr.bf16.mxu0 0
        %502 = vmatpush1.bf16.msra.mxu0 %v456
        %503 = vmatprep.subr.bf16.mxu0 0
        %504 = vmatpush1.bf16.msra.mxu0 %v457
        %505 = vmatprep.subr.bf16.mxu0 0
        %506 = vmatpush1.bf16.msra.mxu0 %v458
        %507 = vmatprep.mubr.bf16.mxu0 %v376
        %508 = vmatmul.mubr.bf16.gmra.mrb[0].mxu0 %v375
        %v509 = vpop.f32.mrb[0].mxu0
        %v510 = vadd.f32 %v367, %v509
        %v511 = vpop.f32.mrb[0].mxu0
        %v512 = vpop.f32.mrb[0].mxu0
        %v513 = vadd.f32 %v367, %v512
        %v514 = vpop.f32.mrb[0].mxu0
        %515 = vdwg.mxu0
        %v516 = vpack.c.bf16 %v513, %v510
        %517 = vst [vmem:[#allocation2] sm:$0xff] %v516
        %v518 = vld [vmem:[#allocation2] sm:$0xff]
        %v519 = vld [vmem:[#allocation11] sm:$0xf]
        %v520 = vld [vmem:[#allocation11 + $0x4] sm:$0xf]
        %v521 = vld [vmem:[#allocation11 + $0x8] sm:$0xf]
        %v522 = vld [vmem:[#allocation11 + $0xc] sm:$0xf]
        %v523 = vld [vmem:[#allocation11 + $0x10] sm:$0xf]
        %v524 = vld [vmem:[#allocation11 + $0x14] sm:$0xf]
        %v525 = vld [vmem:[#allocation11 + $0x18] sm:$0xf]
        %v526 = vld [vmem:[#allocation11 + $0x1c] sm:$0xf]
        %v527 = vld [vmem:[#allocation11 + $0x20] sm:$0xf]
        %v528 = vld [vmem:[#allocation11 + $0x24] sm:$0xf]
        %v529 = vld [vmem:[#allocation11 + $0x28] sm:$0xf]
        %v530 = vld [vmem:[#allocation11 + $0x2c] sm:$0xf]
        %v531 = vld [vmem:[#allocation11 + $0x30] sm:$0xf]
        %v532 = vld [vmem:[#allocation11 + $0x34] sm:$0xf]
        %v533 = vld [vmem:[#allocation11 + $0x38] sm:$0xf]
        %v534 = vld [vmem:[#allocation11 + $0x3c] sm:$0xf]
        %v551 = vunpack.c.l.b16 %v519
        %v552 = vunpack.c.l.b16 %v520
        %v553 = vunpack.c.l.b16 %v521
        %v554 = vunpack.c.l.b16 %v522
        %v555 = vunpack.c.l.b16 %v523
        %v556 = vunpack.c.l.b16 %v524
        %v557 = vunpack.c.l.b16 %v525
        %v558 = vunpack.c.l.b16 %v526
        %v559 = vunpack.c.l.b16 %v527
        %v560 = vunpack.c.l.b16 %v528
        %v561 = vunpack.c.l.b16 %v529
        %v562 = vunpack.c.l.b16 %v530
        %v563 = vunpack.c.l.b16 %v531
        %v564 = vunpack.c.l.b16 %v532
        %v565 = vunpack.c.l.b16 %v533
        %v566 = vunpack.c.l.b16 %v534
        %v567 = vpack.c.b16 %v552, %v551
        %v568 = vpack.c.b16 %v554, %v553
        %v569 = vpack.c.b16 %v556, %v555
        %v570 = vpack.c.b16 %v558, %v557
        %v571 = vpack.c.b16 %v560, %v559
        %v572 = vpack.c.b16 %v562, %v561
        %v573 = vpack.c.b16 %v564, %v563
        %v574 = vpack.c.b16 %v566, %v565
        %583 = vmatprep.subr.bf16.mxu0 0
        %584 = vmatpush1.bf16.msra.mxu0 %v567
        %585 = vmatprep.subr.bf16.mxu0 0
        %586 = vmatpush1.bf16.msra.mxu0 %v568
        %587 = vmatprep.subr.bf16.mxu0 0
        %588 = vmatpush1.bf16.msra.mxu0 %v569
        %589 = vmatprep.subr.bf16.mxu0 0
        %590 = vmatpush1.bf16.msra.mxu0 %v570
        %591 = vmatprep.subr.bf16.mxu0 0
        %592 = vmatpush1.bf16.msra.mxu0 %v571
        %593 = vmatprep.subr.bf16.mxu0 0
        %594 = vmatpush1.bf16.msra.mxu0 %v572
        %595 = vmatprep.subr.bf16.mxu0 0
        %596 = vmatpush1.bf16.msra.mxu0 %v573
        %597 = vmatprep.subr.bf16.mxu0 0
        %598 = vmatpush1.bf16.msra.mxu0 %v574
        %599 = vmatprep.subr.bf16.mxu0 0
        %600 = vmatpush1.bf16.msra.mxu0 0
        %601 = vmatprep.subr.bf16.mxu0 0
        %602 = vmatpush1.bf16.msra.mxu0 0
        %603 = vmatprep.subr.bf16.mxu0 0
        %604 = vmatpush1.bf16.msra.mxu0 0
        %605 = vmatprep.subr.bf16.mxu0 0
        %606 = vmatpush1.bf16.msra.mxu0 0
        %607 = vmatprep.subr.bf16.mxu0 0
        %608 = vmatpush1.bf16.msra.mxu0 0
        %609 = vmatprep.subr.bf16.mxu0 0
        %610 = vmatpush1.bf16.msra.mxu0 0
        %611 = vmatprep.subr.bf16.mxu0 0
        %612 = vmatpush1.bf16.msra.mxu0 0
        %613 = vmatprep.subr.bf16.mxu0 0
        %614 = vmatpush1.bf16.msra.mxu0 0
        %615 = vmatprep.mubr.bf16.mxu0 0
        %616 = vmatmul.mubr.bf16.gmra.mrb[0].mxu0 %v518
        %v617 = vpop.f32.mrb[0].mxu0
        %v618 = vadd.f32 0.0, %v617
        %v619 = vpop.f32.mrb[0].mxu0
        %v620 = vpop.f32.mrb[0].mxu0
        %v621 = vadd.f32 0.0, %v620
        %v622 = vpop.f32.mrb[0].mxu0
        %623 = vdwg.mxu0
        %624 = vst [vmem:[#allocation3] sm:$0xff] %v618
        %625 = vst [vmem:[#allocation3 + $0x8] sm:$0xff] %v621
        %v626 = vld [vmem:[%s5] sm:$0x1]
        %s627 = sld [smem:[#allocation5]]
        loop: start=0, step=1, limit=16
        $region61: #{tpu_custom_call.1} parent=47 // loop_pre_header
          _
        $region62: #{tpu_custom_call.1} parent=47 // loop_header
          %s629 = sphi 0, %s633
          %p630 = scmp.ge.s32.totalorder %s629, 16
        $region63: #{tpu_custom_call.1} parent=47 // loop_header_branch
          %632 = sbr.rel (%p630) target = $region67
        $region64: #{tpu_custom_call.1} parent=47 // loop_body
          %s634 = scalar_lea.vmem %s4, %s629
          %v635 = vld [vmem:[%s634] sm:$0x1]
          %v636 = vld [vmem:[#allocation3] sm:$0xff]
          %v637 = vld [vmem:[#allocation3 + $0x8] sm:$0xff]
          %v638 = vlaneseq
          %v639 = vshrl.u32 %v638, 7
          %v640 = vsub.s32 0, %v639
          %v641 = vrot.slane %v635, %v640
          %v642 = vmul.f32 %v641, %v636
          %v643 = vmul.f32 %v641, %v637
          %v644 = vtanh.pop %v642
          %v645 = vtanh.pop %v643
          %646 = vmatprep.subr.mxu0 0.0
          %647 = vmatpush1.xpose.msra.mxu0 %v644
          %648 = vmatprep.subr.mxu0 0.0
          %649 = vmatpush1.xpose.msra.mxu0 %v645
          %650 = vmatprep.subr.mxu0 0.0
          %651 = vmatpush1.xpose.msra.mxu0 0.0
          %652 = vmatprep.subr.mxu0 0.0
          %653 = vmatpush1.xpose.msra.mxu0 0.0
          %654 = vmatprep.subr.mxu0 0.0
          %655 = vmatpush1.xpose.msra.mxu0 0.0
          %656 = vmatprep.subr.mxu0 0.0
          %657 = vmatpush1.xpose.msra.mxu0 0.0
          %658 = vmatprep.subr.mxu0 0.0
          %659 = vmatpush1.xpose.msra.mxu0 0.0
          %660 = vmatprep.subr.mxu0 0.0
          %661 = vmatpush1.xpose.msra.mxu0 0.0
          %662 = vmatprep.subr.mxu0 0.0
          %663 = vmatpush1.xpose.msra.mxu0 0.0
          %664 = vmatprep.subr.mxu0 0.0
          %665 = vmatpush1.xpose.msra.mxu0 0.0
          %666 = vmatprep.subr.mxu0 0.0
          %667 = vmatpush1.xpose.msra.mxu0 0.0
          %668 = vmatprep.subr.mxu0 0.0
          %669 = vmatpush1.xpose.msra.mxu0 0.0
          %670 = vmatprep.subr.mxu0 0.0
          %671 = vmatpush1.xpose.msra.mxu0 0.0
          %672 = vmatprep.subr.mxu0 0.0
          %673 = vmatpush1.xpose.msra.mxu0 0.0
          %674 = vmatprep.subr.mxu0 0.0
          %675 = vmatpush1.xpose.msra.mxu0 0.0
          %676 = vmatprep.subr.mxu0 0.0
          %677 = vmatpush1.xpose.msra.mxu0 0.0
          %678 = vmatprep.subr.mxu0 0.0
          %679 = vmatpush1.xpose.msra.mxu0 0.0
          %680 = vmatprep.subr.mxu0 0.0
          %681 = vmatpush1.xpose.msra.mxu0 0.0
          %682 = vmatprep.subr.mxu0 0.0
          %683 = vmatpush1.xpose.msra.mxu0 0.0
          %684 = vmatprep.subr.mxu0 0.0
          %685 = vmatpush1.xpose.msra.mxu0 0.0
          %686 = vmatprep.subr.mxu0 0.0
          %687 = vmatpush1.xpose.msra.mxu0 0.0
          %688 = vmatprep.subr.mxu0 0.0
          %689 = vmatpush1.xpose.msra.mxu0 0.0
          %690 = vmatprep.subr.mxu0 0.0
          %691 = vmatpush1.xpose.msra.mxu0 0.0
          %692 = vmatprep.subr.mxu0 0.0
          %693 = vmatpush1.xpose.msra.mxu0 0.0
          %694 = vmatprep.subr.mxu0 0.0
          %695 = vmatpush1.xpose.msra.mxu0 0.0
          %696 = vmatprep.subr.mxu0 0.0
          %697 = vmatpush1.xpose.msra.mxu0 0.0
          %698 = vmatprep.subr.mxu0 0.0
          %699 = vmatpush1.xpose.msra.mxu0 0.0
          %700 = vmatprep.subr.mxu0 0.0
          %701 = vmatpush1.xpose.msra.mxu0 0.0
          %702 = vmatprep.subr.mxu0 0.0
          %703 = vmatpush1.xpose.msra.mxu0 0.0
          %704 = vmatprep.subr.mxu0 0.0
          %705 = vmatpush1.xpose.msra.mxu0 0.0
          %706 = vmatprep.subr.mxu0 0.0
          %707 = vmatpush1.xpose.msra.mxu0 0.0
          %708 = vmatprep.subr.mxu0 0.0
          %709 = vmatpush1.xpose.msra.mxu0 0.0
          %710 = vmatprep.mubr.f32.mxu0 0.0
          %711 = vmatmul.mubr.f32.gmra.mrb[0].mxu0 %v626
          %v712 = vpop.f32.mrb[0].mxu0
          %v713 = vadd.f32 0.0, %v712
          %v714 = vpop.f32.mrb[0].mxu0
          %715 = vdwg.mxu0
          %s716 = scalar_lea.vmem [#allocation4], %s629
          %vm717 = vcmask 122880
          %718 = vst.msk [vmem:[%s716] sm:$0x1] %vm717, %v713
        $region65: #{tpu_custom_call.1} parent=47 // loop_footer
          %s633 = sadd.s32 1, %s629
        $region66: #{tpu_custom_call.1} parent=47 // loop_footer_branch
          %628 = sbr.rel target = $region62
        $region67: #{tpu_custom_call.1} parent=47 // loop_exit
          _
        %v719 = vld [vmem:[#allocation4] sm:$0xff]
        %v720 = vld [vmem:[#allocation4 + $0x8] sm:$0xff]
        %v721 = vstv %s627
        %v722 = vadd.f32 %v719, %v721
        %v723 = vadd.f32 %v720, %v721
        %vm724 = vcmask 130048
        %v725 = vsel %vm724, %v722, -inf
        %726 = vmax.xlane.f32.xlu0 %v725
        %v727 = vpop.xlane.xlu0 %726
        %v728 = vsel %vm724, %v723, -inf
        %729 = vmax.xlane.f32.xlu0 %v728
        %v730 = vpop.xlane.xlu0 %729
        %v731 = vsub.f32 %v722, %v727
        %v732 = vsub.f32 %v723, %v730
        %v733 = vmul.f32 %v731, 1.442695
        %v734 = vpow.pop %v733
        %v735 = vmul.f32 %v732, 1.442695
        %v736 = vpow.pop %v735
        %v737 = vsel %vm724, %v734, 0.0
        %738 = vadd.xlane.f32.xlu0 %v737
        %v739 = vpop.xlane.xlu0 %738
        %v740 = vsel %vm724, %v736, 0.0
        %741 = vadd.xlane.f32.xlu0 %v740
        %v742 = vpop.xlane.xlu0 %741
        %v743 = vrcp.pop %v739
        %v744 = vrcp.pop %v742
        %v745 = vmul.f32 %v734, %v743
        %v746 = vmul.f32 %v736, %v744
        %v747 = vpack.c.bf16 %v746, %v745
        %v748 = vld [vmem:[#allocation2] sm:$0xff]
        %v750 = vsel %vm724, %v747, 0
        %752 = vmatprep.subr.bf16.mxu0 0
        %753 = vmatpush1.bf16.msra.mxu0 %v748
        %754 = vmatprep.subr.bf16.mxu0 0
        %755 = vmatpush1.bf16.msra.mxu0 0
        %756 = vmatprep.subr.bf16.mxu0 0
        %757 = vmatpush1.bf16.msra.mxu0 0
        %758 = vmatprep.subr.bf16.mxu0 0
        %759 = vmatpush1.bf16.msra.mxu0 0
        %760 = vmatprep.subr.bf16.mxu0 0
        %761 = vmatpush1.bf16.msra.mxu0 0
        %762 = vmatprep.subr.bf16.mxu0 0
        %763 = vmatpush1.bf16.msra.mxu0 0
        %764 = vmatprep.subr.bf16.mxu0 0
        %765 = vmatpush1.bf16.msra.mxu0 0
        %766 = vmatprep.subr.bf16.mxu0 0
        %767 = vmatpush1.bf16.msra.mxu0 0
        %768 = vmatprep.subr.bf16.mxu0 0
        %769 = vmatpush1.bf16.msra.mxu0 0
        %770 = vmatprep.subr.bf16.mxu0 0
        %771 = vmatpush1.bf16.msra.mxu0 0
        %772 = vmatprep.subr.bf16.mxu0 0
        %773 = vmatpush1.bf16.msra.mxu0 0
        %774 = vmatprep.subr.bf16.mxu0 0
        %775 = vmatpush1.bf16.msra.mxu0 0
        %776 = vmatprep.subr.bf16.mxu0 0
        %777 = vmatpush1.bf16.msra.mxu0 0
        %778 = vmatprep.subr.bf16.mxu0 0
        %779 = vmatpush1.bf16.msra.mxu0 0
        %780 = vmatprep.subr.bf16.mxu0 0
        %781 = vmatpush1.bf16.msra.mxu0 0
        %782 = vmatprep.subr.bf16.mxu0 0
        %783 = vmatpush1.bf16.msra.mxu0 0
        %784 = vmatprep.mubr.bf16.mxu0 0
        %785 = vmatmul.mubr.bf16.gmra.mrb[0].mxu0 %v750
        %v786 = vpop.f32.mrb[0].mxu0
        %v787 = vadd.f32 0.0, %v786
        %v788 = vpop.f32.mrb[0].mxu0
        %v789 = vpop.f32.mrb[0].mxu0
        %v790 = vadd.f32 0.0, %v789
        %v791 = vpop.f32.mrb[0].mxu0
        %792 = vdwg.mxu0
        %793 = vst [vmem:[%s326] sm:$0xff] %v787
        %794 = vst [vmem:[%s326 + $0x8] sm:$0xff] %v790
        %s795 = sand.u32 %s186, 1
        %s796 = scalar_lea.sflag [#allocation8], %s795
        %s797 = sand.u32 %s186, 1
        %s798 = smul.addr %s797, 16
        %s799 = scalar_lea.vmem [#allocation12], %s798
        // Predicated region
        $region68: #{tpu_custom_call.1} parent=47 // pred_check
          %p800 = pneg %p196
        $region69: #{tpu_custom_call.1} parent=47 // pred_check_branch
          %802 = sbr.rel (%p800) target = $region71
        $region70: #{tpu_custom_call.1} parent=47 // pred_region
          %s804 = ssub.s32 256, 256
          %805 = vsyncadd %s796, %s804
          %s806 = smul.addr %s26, 2
          %s807 = smul.addr %s806, 128
          %s808 = scalar_lea.hbm %s7, %s807
          %s809 = sshll.u32 %s799, 4
          %s810 = int_to_ptr.vmem [resolvable:$true] %s809
          %815 = dma.vmem_to_hbm [thread:$0]  %s810, 256, %s808, %s796, 128, 128, 8
        $region71: #{tpu_custom_call.1} parent=47 // pred_fallthru
          _
      $region48: #{tpu_custom_call.1} parent=5 // pred_fallthru
        _
      %p816 = scmp.le.s32.totalorder 2, %s21
      // Predicated region
      $region72: #{tpu_custom_call.1} parent=5 // pred_check
        %p817 = pneg %p816
      $region73: #{tpu_custom_call.1} parent=5 // pred_check_branch
        %819 = sbr.rel (%p817) target = $region75
      $region74: #{tpu_custom_call.1} parent=5 // pred_region
        %s820 = ssub.s32 %s21, 2
        // Predicated region
        $region76: #{tpu_custom_call.1} parent=74 // pred_check
          %p821 = pneg %p202
        $region77: #{tpu_custom_call.1} parent=74 // pred_check_branch
          %823 = sbr.rel (%p821) target = $region79
        $region78: #{tpu_custom_call.1} parent=74 // pred_region
          %s824 = sand.u32 %s187, 1
          %s825 = scalar_lea.sflag [#allocation8], %s824
          %s826 = sand.u32 %s187, 1
          %s827 = smul.addr %s826, 16
          %s828 = scalar_lea.vmem [#allocation12], %s827
          %829 = dma.done %s825, 256
        $region79: #{tpu_custom_call.1} parent=74 // pred_fallthru
          _
      $region75: #{tpu_custom_call.1} parent=5 // pred_fallthru
        _
    $region6: #{tpu_custom_call.1} parent=1 // loop_footer
      %s25 = sadd.s32 1, %s21
    $region7: #{tpu_custom_call.1} parent=1 // loop_footer_branch
      %20 = sbr.rel target = $region3
    $region8: #{tpu_custom_call.1} parent=1 // loop_exit
      _
    %830 = vsyncpa [#allocation7], 1
    %s831 = scalar_lea.sflag [#allocation7], 1
    %832 = vsyncpa %s831, 1
    %833 = vsyncpa [#allocation10], 1
    %834 = vsyncpa [#allocation8], 1
    %s835 = scalar_lea.sflag [#allocation8], 1
    %836 = vsyncpa %s835, 1

// kernel: tpu_custom_call.1
$region0: #{tpu_custom_call.1}
  #allocation0 [shape = 'u32[]', space=smem, size = 0x4, offset = 0x4, fixed_abs, tag = 'smem constant byte address 0x4 - core index']
  #allocation1 [shape = 'u32[144,128]{1,0:T(1,128)}', space=vmem, size = 0x12000, scoped, tag = 'internal scratch']
  #allocation2 [shape = 'bf16[16,128]{1,0:T(16,128)(2,1)}', space=vmem, size = 0x1000, scoped, tag = 'scratch operand']
  #allocation3 [shape = 'f32[16,128]{1,0:T(8,128)}', space=vmem, size = 0x2000, scoped, tag = 'scratch operand']
  #allocation4 [shape = 'f32[16,16]{1,0:T(8,128)}', space=vmem, size = 0x2000, scoped, tag = 'scratch operand']
  #allocation5 [shape = 'f32[1,1]{1,0:T(1,128)S(6)}', space=smem, size = 0x200, scoped, tag = 'scoped memory for tpu_custom_call.1']
  %s0 = inlined_call_operand.hbm [shape: bf16[2,16,256], index: 0, kind: input, shape index: {}]
  %s1 = inlined_call_operand.hbm [shape: bf16[256,128], index: 1, kind: input, shape index: {}]
  %s2 = inlined_call_operand.vmem [shape: f32[1,128], index: 2, kind: input, shape index: {}]
  %s3 = inlined_call_operand.hbm [shape: bf16[128,128], index: 3, kind: input, shape index: {}]
  %s4 = inlined_call_operand.vmem [shape: f32[16,128], index: 4, kind: input, shape index: {}]
  %s5 = inlined_call_operand.vmem [shape: f32[1,128], index: 5, kind: input, shape index: {}]
  %s6 = inlined_call_operand.<no memory space> [shape: f32[1,1], index: 6, kind: input, shape index: {}]
  %s7 = inlined_call_operand.hbm [shape: f32[2,16,128], index: 7, kind: output, shape index: {}]
  %s8 = sld [smem:[#allocation0]]
  $region80: #{tpu_custom_call.1} parent=0
    _
  %s10 = ssub.s32 1, %s8
  %s11 = scalar_select 0, %s10, %s8
  %12 = sst [smem:[#allocation5]] %s6
  $region1: #{tpu_custom_call.1} parent=0
    #allocation6 [shape = 'u8[16384]{0}', space=vmem, size = 0x4000, scoped, tag = 'input window, operand 0']
    #allocation7 [shape = 's32[2]{0}', space=sflag, size = 0x8, scoped, tag = 'scoped memory for tpu_custom_call.1']
    #allocation8 [shape = 's32[2]{0}', space=sflag, size = 0x8, scoped, tag = 'scoped memory for tpu_custom_call.1']
    #allocation9 [shape = 'u8[65536]{0}', space=vmem, size = 0x10000, scoped, tag = 'input window, operand 1, single buffered']
    #allocation10 [shape = 's32[1]{0}', space=sflag, size = 0x4, scoped, tag = 'scoped memory for tpu_custom_call.1']
    #allocation11 [shape = 'u8[32768]{0}', space=vmem, size = 0x8000, scoped, tag = 'input window, operand 3, single buffered']
    #allocation12 [shape = 'u8[16384]{0}', space=vmem, size = 0x4000, scoped, tag = 'output window, operand 0']
    %13 = vsyncpa [#allocation7], 0
    %s14 = scalar_lea.sflag [#allocation7], 1
    %15 = vsyncpa %s14, 0
    %16 = vsyncpa [#allocation10], 0
    %17 = vsyncpa [#allocation8], 0
    %s18 = scalar_lea.sflag [#allocation8], 1
    %19 = vsyncpa %s18, 0
    loop: start=0, step=1, limit=4
    $region2: #{tpu_custom_call.1} parent=1 // loop_pre_header
      _
    $region3: #{tpu_custom_call.1} parent=1 // loop_header
      %s21 = sphi 0, %s25
      %p22 = scmp.ge.s32.totalorder %s21, 4
      %s31 = sphi 0, %s33
      %s34 = sphi 0, %s31
      %s35 = sphi 0, %s34
      %s51 = sphi 0, %s35
      %s55 = sphi 0, %s55
      %s57 = sphi 0, %s55
      %s58 = sphi 0, %s57
      %s72 = sphi 0, %s58
      %s76 = sphi 0, %s76
      %s78 = sphi 0, %s76
      %s79 = sphi 0, %s78
      %s93 = sphi 0, %s79
      %s97 = sphi 0, %s97
      %s99 = sphi 0, %s97
      %s100 = sphi 0, %s99
      %s114 = sphi 0, %s100
      %s118 = sphi 0, %s118
      %s120 = sphi 0, %s118
      %s121 = sphi 0, %s120
      %s135 = sphi 0, %s121
      %s139 = sphi 0, %s139
      %s141 = sphi 0, %s139
      %s142 = sphi 0, %s141
      %s156 = sphi 0, %s142
      %s160 = sphi 0, %s160
      %s162 = sphi 0, %s160
      %s163 = sphi 0, %s162
      %s177 = sphi 0, %s163
      %s183 = sphi 0, %s185
      %s186 = sphi 0, %s183
      %s187 = sphi 0, %s186
      %s203 = sphi 0, %s187
    $region4: #{tpu_custom_call.1} parent=1 // loop_header_branch
      %24 = sbr.rel (%p22) target = $region8
    $region5: #{tpu_custom_call.1} parent=1 // loop_body
      %s26 = ssub.s32 %s21, 1
      %s27 = ssub.s32 %s21, 2
      %s28 = sadd.s32 %s21, 1
      %s29 = ssub.s32 %s21, %s28
      %p30 = scmp.eq.s32.totalorder %s29, 0
      %s32 = sadd.s32 %s31, 1
      %s33 = scalar_select %p30, %s31, %s32
      %p36 = pneg %p30
      %p37 = scmp.eq.s32.totalorder %s21, 1
      %p38 = por %p36, %p37
      %p39 = scmp.ne.s32.totalorder %s31, %s34
      %p40 = scmp.eq.s32.totalorder %s21, 0
      %p41 = por %p39, %p40
      %p42 = scmp.ne.s32.totalorder %s31, %s34
      %p43 = scmp.eq.s32.totalorder %s26, 1
      %p44 = por %p42, %p43
      %p45 = scmp.ne.s32.totalorder %s34, %s35
      %p46 = scmp.eq.s32.totalorder %s26, 0
      %p47 = por %p45, %p46
      %p48 = scmp.ne.s32.totalorder %s34, %s35
      %p49 = scmp.eq.s32.totalorder %s27, 1
      %p50 = por %p48, %p49
      %p52 = scmp.ne.s32.totalorder %s35, %s51
      %p53 = scmp.eq.s32.totalorder %s27, 0
      %p54 = por %p52, %p53
      %s56 = sadd.s32 %s55, 1
      %p59 = scmp.eq.s32.totalorder %s21, 1
      %p60 = scmp.ne.s32.totalorder %s55, %s57
      %p61 = scmp.eq.s32.totalorder %s21, 0
      %p62 = por %p60, %p61
      %p63 = scmp.ne.s32.totalorder %s55, %s57
      %p64 = scmp.eq.s32.totalorder %s26, 1
      %p65 = por %p63, %p64
      %p66 = scmp.ne.s32.totalorder %s57, %s58
      %p67 = scmp.eq.s32.totalorder %s26, 0
      %p68 = por %p66, %p67
      %p69 = scmp.ne.s32.totalorder %s57, %s58
      %p70 = scmp.eq.s32.totalorder %s27, 1
      %p71 = por %p69, %p70
      %p73 = scmp.ne.s32.totalorder %s58, %s72
      %p74 = scmp.eq.s32.totalorder %s27, 0
      %p75 = por %p73, %p74
      %s77 = sadd.s32 %s76, 1
      %p80 = scmp.eq.s32.totalorder %s21, 1
      %p81 = scmp.ne.s32.totalorder %s76, %s78
      %p82 = scmp.eq.s32.totalorder %s21, 0
      %p83 = por %p81, %p82
      %p84 = scmp.ne.s32.totalorder %s76, %s78
      %p85 = scmp.eq.s32.totalorder %s26, 1
      %p86 = por %p84, %p85
      %p87 = scmp.ne.s32.totalorder %s78, %s79
      %p88 = scmp.eq.s32.totalorder %s26, 0
      %p89 = por %p87, %p88
      %p90 = scmp.ne.s32.totalorder %s78, %s79
      %p91 = scmp.eq.s32.totalorder %s27, 1
      %p92 = por %p90, %p91
      %p94 = scmp.ne.s32.totalorder %s79, %s93
      %p95 = scmp.eq.s32.totalorder %s27, 0
      %p96 = por %p94, %p95
      %s98 = sadd.s32 %s97, 1
      %p101 = scmp.eq.s32.totalorder %s21, 1
      %p102 = scmp.ne.s32.totalorder %s97, %s99
      %p103 = scmp.eq.s32.totalorder %s21, 0
      %p104 = por %p102, %p103
      %p105 = scmp.ne.s32.totalorder %s97, %s99
      %p106 = scmp.eq.s32.totalorder %s26, 1
      %p107 = por %p105, %p106
      %p108 = scmp.ne.s32.totalorder %s99, %s100
      %p109 = scmp.eq.s32.totalorder %s26, 0
      %p110 = por %p108, %p109
      %p111 = scmp.ne.s32.totalorder %s99, %s100
      %p112 = scmp.eq.s32.totalorder %s27, 1
      %p113 = por %p111, %p112
      %p115 = scmp.ne.s32.totalorder %s100, %s114
      %p116 = scmp.eq.s32.totalorder %s27, 0
      %p117 = por %p115, %p116
      %s119 = sadd.s32 %s118, 1
      %p122 = scmp.eq.s32.totalorder %s21, 1
      %p123 = scmp.ne.s32.totalorder %s118, %s120
      %p124 = scmp.eq.s32.totalorder %s21, 0
      %p125 = por %p123, %p124
      %p126 = scmp.ne.s32.totalorder %s118, %s120
      %p127 = scmp.eq.s32.totalorder %s26, 1
      %p128 = por %p126, %p127
      %p129 = scmp.ne.s32.totalorder %s120, %s121
      %p130 = scmp.eq.s32.totalorder %s26, 0
      %p131 = por %p129, %p130
      %p132 = scmp.ne.s32.totalorder %s120, %s121
      %p133 = scmp.eq.s32.totalorder %s27, 1
      %p134 = por %p132, %p133
      %p136 = scmp.ne.s32.totalorder %s121, %s135
      %p137 = scmp.eq.s32.totalorder %s27, 0
      %p138 = por %p136, %p137
      %s140 = sadd.s32 %s139, 1
      %p143 = scmp.eq.s32.totalorder %s21, 1
      %p144 = scmp.ne.s32.totalorder %s139, %s141
      %p145 = scmp.eq.s32.totalorder %s21, 0
      %p146 = por %p144, %p145
      %p147 = scmp.ne.s32.totalorder %s139, %s141
      %p148 = scmp.eq.s32.totalorder %s26, 1
      %p149 = por %p147, %p148
      %p150 = scmp.ne.s32.totalorder %s141, %s142
      %p151 = scmp.eq.s32.totalorder %s26, 0
      %p152 = por %p150, %p151
      %p153 = scmp.ne.s32.totalorder %s141, %s142
      %p154 = scmp.eq.s32.totalorder %s27, 1
      %p155 = por %p153, %p154
      %p157 = scmp.ne.s32.totalorder %s142, %s156
      %p158 = scmp.eq.s32.totalorder %s27, 0
      %p159 = por %p157, %p158
      %s161 = sadd.s32 %s160, 1
      %p164 = scmp.eq.s32.totalorder %s21, 1
      %p165 = scmp.ne.s32.totalorder %s160, %s162
      %p166 = scmp.eq.s32.totalorder %s21, 0
      %p167 = por %p165, %p166
      %p168 = scmp.ne.s32.totalorder %s160, %s162
      %p169 = scmp.eq.s32.totalorder %s26, 1
      %p170 = por %p168, %p169
      %p171 = scmp.ne.s32.totalorder %s162, %s163
      %p172 = scmp.eq.s32.totalorder %s26, 0
      %p173 = por %p171, %p172
      %p174 = scmp.ne.s32.totalorder %s162, %s163
      %p175 = scmp.eq.s32.totalorder %s27, 1
      %p176 = por %p174, %p175
      %p178 = scmp.ne.s32.totalorder %s163, %s177
      %p179 = scmp.eq.s32.totalorder %s27, 0
      %p180 = por %p178, %p179
      %s181 = ssub.s32 %s21, %s28
      %p182 = scmp.eq.s32.totalorder %s181, 0
      %s184 = sadd.s32 %s183, 1
      %s185 = scalar_select %p182, %s183, %s184
      %p188 = pneg %p182
      %p189 = scmp.eq.s32.totalorder %s21, 1
      %p190 = por %p188, %p189
      %p191 = scmp.ne.s32.totalorder %s183, %s186
      %p192 = scmp.eq.s32.totalorder %s21, 0
      %p193 = por %p191, %p192
      %p194 = scmp.ne.s32.totalorder %s183, %s186
      %p195 = scmp.eq.s32.totalorder %s26, 1
      %p196 = por %p194, %p195
      %p197 = scmp.ne.s32.totalorder %s186, %s187
      %p198 = scmp.eq.s32.totalorder %s26, 0
      %p199 = por %p197, %p198
      %p200 = scmp.ne.s32.totalorder %s186, %s187
      %p201 = scmp.eq.s32.totalorder %s27, 1
      %p202 = por %p200, %p201
      %p204 = scmp.ne.s32.totalorder %s187, %s203
      %p205 = scmp.eq.s32.totalorder %s27, 0
      %p206 = por %p204, %p205
      %p207 = scmp.le.s32.totalorder 1, %s21
      %p208 = scmp.lt.s32.totalorder %s21, 3
      %p209 = pnand %p207, %p208
      %p210 = pneg %p209
      // Predicated region
      $region9: #{tpu_custom_call.1} parent=5 // pred_check
        _
      $region10: #{tpu_custom_call.1} parent=5 // pred_check_branch
        %212 = sbr.rel (%p209) target = $region12
      $region11: #{tpu_custom_call.1} parent=5 // pred_region
        %s213 = ssub.s32 %s21, 1
        // Predicated region
        $region13: #{tpu_custom_call.1} parent=11 // pred_check
          %p214 = pneg %p68
        $region14: #{tpu_custom_call.1} parent=11 // pred_check_branch
          %216 = sbr.rel (%p214) target = $region16
        $region15: #{tpu_custom_call.1} parent=11 // pred_region
          %s218 = ssub.s32 2048, 2048
          %219 = vsyncadd [#allocation10], %s218
          %s220 = sshll.u32 [#allocation9], 4
          %s221 = int_to_ptr.vmem [resolvable:$true] %s220
          %226 = dma.hbm_to_vmem [thread:$0]  %s1, 2048, %s221, [#allocation10], 64, 64, 4
        $region16: #{tpu_custom_call.1} parent=11 // pred_fallthru
          _
        // Predicated region
        $region17: #{tpu_custom_call.1} parent=11 // pred_check
          %p227 = pneg %p89
        $region18: #{tpu_custom_call.1} parent=11 // pred_check_branch
          %229 = sbr.rel (%p227) target = $region20
        $region19: #{tpu_custom_call.1} parent=11 // pred_region
          _
        $region20: #{tpu_custom_call.1} parent=11 // pred_fallthru
          _
        // Predicated region
        $region21: #{tpu_custom_call.1} parent=11 // pred_check
          %p230 = pneg %p110
        $region22: #{tpu_custom_call.1} parent=11 // pred_check_branch
          %232 = sbr.rel (%p230) target = $region24
        $region23: #{tpu_custom_call.1} parent=11 // pred_region
          %s234 = ssub.s32 1024, 1024
          %235 = vsyncadd [#allocation10], %s234
          %s236 = sshll.u32 [#allocation11], 4
          %s237 = int_to_ptr.vmem [resolvable:$true] %s236
          %242 = dma.hbm_to_vmem [thread:$0]  %s3, 1024, %s237, [#allocation10], 64, 64, 4
        $region24: #{tpu_custom_call.1} parent=11 // pred_fallthru
          _
        // Predicated region
        $region25: #{tpu_custom_call.1} parent=11 // pred_check
          %p243 = pneg %p131
        $region26: #{tpu_custom_call.1} parent=11 // pred_check_branch
          %245 = sbr.rel (%p243) target = $region28
        $region27: #{tpu_custom_call.1} parent=11 // pred_region
          _
        $region28: #{tpu_custom_call.1} parent=11 // pred_fallthru
          _
        // Predicated region
        $region29: #{tpu_custom_call.1} parent=11 // pred_check
          %p246 = pneg %p152
        $region30: #{tpu_custom_call.1} parent=11 // pred_check_branch
          %248 = sbr.rel (%p246) target = $region32
        $region31: #{tpu_custom_call.1} parent=11 // pred_region
          _
        $region32: #{tpu_custom_call.1} parent=11 // pred_fallthru
          _
        // Predicated region
        $region33: #{tpu_custom_call.1} parent=11 // pred_check
          %p249 = pneg %p173
        $region34: #{tpu_custom_call.1} parent=11 // pred_check_branch
          %251 = sbr.rel (%p249) target = $region36
        $region35: #{tpu_custom_call.1} parent=11 // pred_region
          _
        $region36: #{tpu_custom_call.1} parent=11 // pred_fallthru
          _
      $region12: #{tpu_custom_call.1} parent=5 // pred_fallthru
        _
      %p252 = scmp.lt.s32.totalorder %s21, 2
      // Predicated region
      $region37: #{tpu_custom_call.1} parent=5 // pred_check
        %p253 = pneg %p252
      $region38: #{tpu_custom_call.1} parent=5 // pred_check_branch
        %255 = sbr.rel (%p253) target = $region40
      $region39: #{tpu_custom_call.1} parent=5 // pred_region
        // Predicated region
        $region41: #{tpu_custom_call.1} parent=39 // pred_check
          %p256 = pneg %p41
        $region42: #{tpu_custom_call.1} parent=39 // pred_check_branch
          %258 = sbr.rel (%p256) target = $region44
        $region43: #{tpu_custom_call.1} parent=39 // pred_region
          %s259 = sand.u32 %s31, 1
          %s260 = scalar_lea.sflag [#allocation7], %s259
          %s261 = sand.u32 %s31, 1
          %s262 = smul.addr %s261, 16
          %s263 = scalar_lea.vmem [#allocation6], %s262
          %s265 = ssub.s32 256, 256
          %266 = vsyncadd %s260, %s265
          %s267 = smul.addr %s21, 4
          %s268 = smul.addr %s267, 64
          %s269 = scalar_lea.hbm %s0, %s268
          %s270 = sshll.u32 %s263, 4
          %s271 = int_to_ptr.vmem [resolvable:$true] %s270
          %276 = dma.hbm_to_vmem [thread:$0]  %s269, 256, %s271, %s260, 128, 128, 8
        $region44: #{tpu_custom_call.1} parent=39 // pred_fallthru
          _
      $region40: #{tpu_custom_call.1} parent=5 // pred_fallthru
        _
      %p277 = scmp.le.s32.totalorder 1, %s21
      %p278 = scmp.lt.s32.totalorder %s21, 3
      %p279 = pnand %p277, %p278
      %p280 = pneg %p279
      // Predicated region
      $region45: #{tpu_custom_call.1} parent=5 // pred_check
        _
      $region46: #{tpu_custom_call.1} parent=5 // pred_check_branch
        %282 = sbr.rel (%p279) target = $region48
      $region47: #{tpu_custom_call.1} parent=5 // pred_region
        %s283 = ssub.s32 %s21, 1
        %s284 = sand.u32 %s34, 1
        %s285 = scalar_lea.sflag [#allocation7], %s284
        %s286 = sand.u32 %s34, 1
        %s287 = smul.addr %s286, 16
        %s288 = scalar_lea.vmem [#allocation6], %s287
        // Predicated region
        $region49: #{tpu_custom_call.1} parent=47 // pred_check
          %p289 = pneg %p47
        $region50: #{tpu_custom_call.1} parent=47 // pred_check_branch
          %291 = sbr.rel (%p289) target = $region52
        $region51: #{tpu_custom_call.1} parent=47 // pred_region
          %292 = dma.done %s285, 256
        $region52: #{tpu_custom_call.1} parent=47 // pred_fallthru
          _
        // Predicated region
        $region53: #{tpu_custom_call.1} parent=47 // pred_check
          %p293 = pneg %p68
        $region54: #{tpu_custom_call.1} parent=47 // pred_check_branch
          %295 = sbr.rel (%p293) target = $region56
        $region55: #{tpu_custom_call.1} parent=47 // pred_region
          %296 = dma.done [#allocation10], 2048
        $region56: #{tpu_custom_call.1} parent=47 // pred_fallthru
          _
        // Predicated region
        $region57: #{tpu_custom_call.1} parent=47 // pred_check
          %p297 = pneg %p110
        $region58: #{tpu_custom_call.1} parent=47 // pred_check_branch
          %299 = sbr.rel (%p297) target = $region60
        $region59: #{tpu_custom_call.1} parent=47 // pred_region
          %300 = dma.done [#allocation10], 1024
        $region60: #{tpu_custom_call.1} parent=47 // pred_fallthru
          _
        %s301 = sand.u32 %s34, 1
        %s302 = scalar_lea.sflag [#allocation7], %s301
        %s303 = sand.u32 %s34, 1
        %s304 = smul.addr %s303, 16
        %s305 = scalar_lea.vmem [#allocation6], %s304
        %p306 = pneg %p47
        %p307 = pneg %p44
        %p308 = pneg %p68
        %p309 = pneg %p65
        %p310 = pneg %p89
        %p311 = pneg %p86
        %p312 = pneg %p110
        %p313 = pneg %p107
        %p314 = pneg %p131
        %p315 = pneg %p128
        %p316 = pneg %p152
        %p317 = pneg %p149
        %p318 = pneg %p173
        %p319 = pneg %p170
        %p320 = pneg %p199
        %p321 = pneg %p196
        %s322 = sand.u32 %s186, 1
        %s323 = scalar_lea.sflag [#allocation8], %s322
        %s324 = sand.u32 %s186, 1
        %s325 = smul.addr %s324, 16
        %s326 = scalar_lea.vmem [#allocation12], %s325
        %v328 = vld [vmem:[%s288] sm:$0xff]
        %v329 = vld [vmem:[%s288 + $0x8] sm:$0xff]
        %v330 = vld [vmem:[#allocation9] sm:$0xf]
        %v331 = vld [vmem:[#allocation9 + $0x4] sm:$0xf]
        %v332 = vld [vmem:[#allocation9 + $0x8] sm:$0xf]
        %v333 = vld [vmem:[#allocation9 + $0xc] sm:$0xf]
        %v334 = vld [vmem:[#allocation9 + $0x10] sm:$0xf]
        %v335 = vld [vmem:[#allocation9 + $0x14] sm:$0xf]
        %v336 = vld [vmem:[#allocation9 + $0x18] sm:$0xf]
        %v337 = vld [vmem:[#allocation9 + $0x1c] sm:$0xf]
        %v338 = vld [vmem:[#allocation9 + $0x20] sm:$0xf]
        %v339 = vld [vmem:[#allocation9 + $0x24] sm:$0xf]
        %v340 = vld [vmem:[#allocation9 + $0x28] sm:$0xf]
        %v341 = vld [vmem:[#allocation9 + $0x2c] sm:$0xf]
        %v342 = vld [vmem:[#allocation9 + $0x30] sm:$0xf]
        %v343 = vld [vmem:[#allocation9 + $0x34] sm:$0xf]
        %v344 = vld [vmem:[#allocation9 + $0x38] sm:$0xf]
        %v345 = vld [vmem:[#allocation9 + $0x3c] sm:$0xf]
        %v346 = vld [vmem:[#allocation9 + $0x40] sm:$0xf]
        %v347 = vld [vmem:[#allocation9 + $0x44] sm:$0xf]
        %v348 = vld [vmem:[#allocation9 + $0x48] sm:$0xf]
        %v349 = vld [vmem:[#allocation9 + $0x4c] sm:$0xf]
        %v350 = vld [vmem:[#allocation9 + $0x50] sm:$0xf]
        %v351 = vld [vmem:[#allocation9 + $0x54] sm:$0xf]
        %v352 = vld [vmem:[#allocation9 + $0x58] sm:$0xf]
        %v353 = vld [vmem:[#allocation9 + $0x5c] sm:$0xf]
        %v354 = vld [vmem:[#allocation9 + $0x60] sm:$0xf]
        %v355 = vld [vmem:[#allocation9 + $0x64] sm:$0xf]
        %v356 = vld [vmem:[#allocation9 + $0x68] sm:$0xf]
        %v357 = vld [vmem:[#allocation9 + $0x6c] sm:$0xf]
        %v358 = vld [vmem:[#allocation9 + $0x70] sm:$0xf]
        %v359 = vld [vmem:[#allocation9 + $0x74] sm:$0xf]
        %v360 = vld [vmem:[#allocation9 + $0x78] sm:$0xf]
        %v361 = vld [vmem:[#allocation9 + $0x7c] sm:$0xf]
        %v362 = vld [vmem:[%s2] sm:$0x1]
        %v364 = vlaneseq
        %v365 = vshrl.u32 %v364, 7
        %v366 = vsub.s32 0, %v365
        %v367 = vrot.slane %v362, %v366
        %v371 = vunpack.c.l.b16 %v328
        %v372 = vunpack.c.h.b16 %v328
        %v373 = vunpack.c.l.b16 %v329
        %v374 = vunpack.c.h.b16 %v329
        %v375 = vpack.c.b16 %v373, %v371
        %v376 = vpack.c.b16 %v374, %v372
        %v411 = vunpack.c.l.b16 %v330
        %v412 = vunpack.c.l.b16 %v331
        %v413 = vunpack.c.l.b16 %v332
        %v414 = vunpack.c.l.b16 %v333
        %v415 = vunpack.c.l.b16 %v334
        %v416 = vunpack.c.l.b16 %v335
        %v417 = vunpack.c.l.b16 %v336
        %v418 = vunpack.c.l.b16 %v337
        %v419 = vunpack.c.l.b16 %v338
        %v420 = vunpack.c.l.b16 %v339
        %v421 = vunpack.c.l.b16 %v340
        %v422 = vunpack.c.l.b16 %v341
        %v423 = vunpack.c.l.b16 %v342
        %v424 = vunpack.c.l.b16 %v343
        %v425 = vunpack.c.l.b16 %v344
        %v426 = vunpack.c.l.b16 %v345
        %v427 = vunpack.c.l.b16 %v346
        %v428 = vunpack.c.l.b16 %v347
        %v429 = vunpack.c.l.b16 %v348
        %v430 = vunpack.c.l.b16 %v349
        %v431 = vunpack.c.l.b16 %v350
        %v432 = vunpack.c.l.b16 %v351
        %v433 = vunpack.c.l.b16 %v352
        %v434 = vunpack.c.l.b16 %v353
        %v435 = vunpack.c.l.b16 %v354
        %v436 = vunpack.c.l.b16 %v355
        %v437 = vunpack.c.l.b16 %v356
        %v438 = vunpack.c.l.b16 %v357
        %v439 = vunpack.c.l.b16 %v358
        %v440 = vunpack.c.l.b16 %v359
        %v441 = vunpack.c.l.b16 %v360
        %v442 = vunpack.c.l.b16 %v361
        %v443 = vpack.c.b16 %v412, %v411
        %v444 = vpack.c.b16 %v414, %v413
        %v445 = vpack.c.b16 %v416, %v415
        %v446 = vpack.c.b16 %v418, %v417
        %v447 = vpack.c.b16 %v420, %v419
        %v448 = vpack.c.b16 %v422, %v421
        %v449 = vpack.c.b16 %v424, %v423
        %v450 = vpack.c.b16 %v426, %v425
        %v451 = vpack.c.b16 %v428, %v427
        %v452 = vpack.c.b16 %v430, %v429
        %v453 = vpack.c.b16 %v432, %v431
        %v454 = vpack.c.b16 %v434, %v433
        %v455 = vpack.c.b16 %v436, %v435
        %v456 = vpack.c.b16 %v438, %v437
        %v457 = vpack.c.b16 %v440, %v439
        %v458 = vpack.c.b16 %v442, %v441
        %475 = vmatprep.subr.bf16.mxu0 0
        %476 = vmatpush1.bf16.msra.mxu0 %v443
        %477 = vmatprep.subr.bf16.mxu0 0
        %478 = vmatpush1.bf16.msra.mxu0 %v444
        %479 = vmatprep.subr.bf16.mxu0 0
        %480 = vmatpush1.bf16.msra.mxu0 %v445
        %481 = vmatprep.subr.bf16.mxu0 0
        %482 = vmatpush1.bf16.msra.mxu0 %v446
        %483 = vmatprep.subr.bf16.mxu0 0
        %484 = vmatpush1.bf16.msra.mxu0 %v447
        %485 = vmatprep.subr.bf16.mxu0 0
        %486 = vmatpush1.bf16.msra.mxu0 %v448
        %487 = vmatprep.subr.bf16.mxu0 0
        %488 = vmatpush1.bf16.msra.mxu0 %v449
        %489 = vmatprep.subr.bf16.mxu0 0
        %490 = vmatpush1.bf16.msra.mxu0 %v450
        %491 = vmatprep.subr.bf16.mxu0 0
        %492 = vmatpush1.bf16.msra.mxu0 %v451
        %493 = vmatprep.subr.bf16.mxu0 0
        %494 = vmatpush1.bf16.msra.mxu0 %v452
        %495 = vmatprep.subr.bf16.mxu0 0
        %496 = vmatpush1.bf16.msra.mxu0 %v453
        %497 = vmatprep.subr.bf16.mxu0 0
        %498 = vmatpush1.bf16.msra.mxu0 %v454
        %499 = vmatprep.subr.bf16.mxu0 0
        %500 = vmatpush1.bf16.msra.mxu0 %v455
        %501 = vmatprep.subr.bf16.mxu0 0
        %502 = vmatpush1.bf16.msra.mxu0 %v456
        %503 = vmatprep.subr.bf16.mxu0 0
        %504 = vmatpush1.bf16.msra.mxu0 %v457
        %505 = vmatprep.subr.bf16.mxu0 0
        %506 = vmatpush1.bf16.msra.mxu0 %v458
        %507 = vmatprep.mubr.bf16.mxu0 %v376
        %508 = vmatmul.mubr.bf16.gmra.mrb[0].mxu0 %v375
        %v509 = vpop.f32.mrb[0].mxu0
        %v510 = vadd.f32 %v367, %v509
        %v511 = vpop.f32.mrb[0].mxu0
        %v512 = vpop.f32.mrb[0].mxu0
        %v513 = vadd.f32 %v367, %v512
        %v514 = vpop.f32.mrb[0].mxu0
        %515 = vdwg.mxu0
        %v516 = vpack.c.bf16 %v513, %v510
        %517 = vst [vmem:[#allocation2] sm:$0xff] %v516
        %v518 = vld [vmem:[#allocation2] sm:$0xff]
        %v519 = vld [vmem:[#allocation11] sm:$0xf]
        %v520 = vld [vmem:[#allocation11 + $0x4] sm:$0xf]
        %v521 = vld [vmem:[#allocation11 + $0x8] sm:$0xf]
        %v522 = vld [vmem:[#allocation11 + $0xc] sm:$0xf]
        %v523 = vld [vmem:[#allocation11 + $0x10] sm:$0xf]
        %v524 = vld [vmem:[#allocation11 + $0x14] sm:$0xf]
        %v525 = vld [vmem:[#allocation11 + $0x18] sm:$0xf]
        %v526 = vld [vmem:[#allocation11 + $0x1c] sm:$0xf]
        %v527 = vld [vmem:[#allocation11 + $0x20] sm:$0xf]
        %v528 = vld [vmem:[#allocation11 + $0x24] sm:$0xf]
        %v529 = vld [vmem:[#allocation11 + $0x28] sm:$0xf]
        %v530 = vld [vmem:[#allocation11 + $0x2c] sm:$0xf]
        %v531 = vld [vmem:[#allocation11 + $0x30] sm:$0xf]
        %v532 = vld [vmem:[#allocation11 + $0x34] sm:$0xf]
        %v533 = vld [vmem:[#allocation11 + $0x38] sm:$0xf]
        %v534 = vld [vmem:[#allocation11 + $0x3c] sm:$0xf]
        %v551 = vunpack.c.l.b16 %v519
        %v552 = vunpack.c.l.b16 %v520
        %v553 = vunpack.c.l.b16 %v521
        %v554 = vunpack.c.l.b16 %v522
        %v555 = vunpack.c.l.b16 %v523
        %v556 = vunpack.c.l.b16 %v524
        %v557 = vunpack.c.l.b16 %v525
        %v558 = vunpack.c.l.b16 %v526
        %v559 = vunpack.c.l.b16 %v527
        %v560 = vunpack.c.l.b16 %v528
        %v561 = vunpack.c.l.b16 %v529
        %v562 = vunpack.c.l.b16 %v530
        %v563 = vunpack.c.l.b16 %v531
        %v564 = vunpack.c.l.b16 %v532
        %v565 = vunpack.c.l.b16 %v533
        %v566 = vunpack.c.l.b16 %v534
        %v567 = vpack.c.b16 %v552, %v551
        %v568 = vpack.c.b16 %v554, %v553
        %v569 = vpack.c.b16 %v556, %v555
        %v570 = vpack.c.b16 %v558, %v557
        %v571 = vpack.c.b16 %v560, %v559
        %v572 = vpack.c.b16 %v562, %v561
        %v573 = vpack.c.b16 %v564, %v563
        %v574 = vpack.c.b16 %v566, %v565
        %583 = vmatprep.subr.bf16.mxu0 0
        %584 = vmatpush1.bf16.msra.mxu0 %v567
        %585 = vmatprep.subr.bf16.mxu0 0
        %586 = vmatpush1.bf16.msra.mxu0 %v568
        %587 = vmatprep.subr.bf16.mxu0 0
        %588 = vmatpush1.bf16.msra.mxu0 %v569
        %589 = vmatprep.subr.bf16.mxu0 0
        %590 = vmatpush1.bf16.msra.mxu0 %v570
        %591 = vmatprep.subr.bf16.mxu0 0
        %592 = vmatpush1.bf16.msra.mxu0 %v571
        %593 = vmatprep.subr.bf16.mxu0 0
        %594 = vmatpush1.bf16.msra.mxu0 %v572
        %595 = vmatprep.subr.bf16.mxu0 0
        %596 = vmatpush1.bf16.msra.mxu0 %v573
        %597 = vmatprep.subr.bf16.mxu0 0
        %598 = vmatpush1.bf16.msra.mxu0 %v574
        %599 = vmatprep.subr.bf16.mxu0 0
        %600 = vmatpush1.bf16.msra.mxu0 0
        %601 = vmatprep.subr.bf16.mxu0 0
        %602 = vmatpush1.bf16.msra.mxu0 0
        %603 = vmatprep.subr.bf16.mxu0 0
        %604 = vmatpush1.bf16.msra.mxu0 0
        %605 = vmatprep.subr.bf16.mxu0 0
        %606 = vmatpush1.bf16.msra.mxu0 0
        %607 = vmatprep.subr.bf16.mxu0 0
        %608 = vmatpush1.bf16.msra.mxu0 0
        %609 = vmatprep.subr.bf16.mxu0 0
        %610 = vmatpush1.bf16.msra.mxu0 0
        %611 = vmatprep.subr.bf16.mxu0 0
        %612 = vmatpush1.bf16.msra.mxu0 0
        %613 = vmatprep.subr.bf16.mxu0 0
        %614 = vmatpush1.bf16.msra.mxu0 0
        %615 = vmatprep.mubr.bf16.mxu0 0
        %616 = vmatmul.mubr.bf16.gmra.mrb[0].mxu0 %v518
        %v617 = vpop.f32.mrb[0].mxu0
        %v618 = vadd.f32 0.0, %v617
        %v619 = vpop.f32.mrb[0].mxu0
        %v620 = vpop.f32.mrb[0].mxu0
        %v621 = vadd.f32 0.0, %v620
        %v622 = vpop.f32.mrb[0].mxu0
        %623 = vdwg.mxu0
        %624 = vst [vmem:[#allocation3] sm:$0xff] %v618
        %625 = vst [vmem:[#allocation3 + $0x8] sm:$0xff] %v621
        %v626 = vld [vmem:[%s5] sm:$0x1]
        %s627 = sld [smem:[#allocation5]]
        loop: start=0, step=1, limit=16
        $region61: #{tpu_custom_call.1} parent=47 // loop_pre_header
          _
        $region62: #{tpu_custom_call.1} parent=47 // loop_header
          %s629 = sphi 0, %s633
          %p630 = scmp.ge.s32.totalorder %s629, 16
        $region63: #{tpu_custom_call.1} parent=47 // loop_header_branch
          %632 = sbr.rel (%p630) target = $region67
        $region64: #{tpu_custom_call.1} parent=47 // loop_body
          %s634 = scalar_lea.vmem %s4, %s629
          %v635 = vld [vmem:[%s634] sm:$0x1]
          %v636 = vld [vmem:[#allocation3] sm:$0xff]
          %v637 = vld [vmem:[#allocation3 + $0x8] sm:$0xff]
          %v638 = vlaneseq
          %v639 = vshrl.u32 %v638, 7
          %v640 = vsub.s32 0, %v639
          %v641 = vrot.slane %v635, %v640
          %v642 = vmul.f32 %v641, %v636
          %v643 = vmul.f32 %v641, %v637
          %v644 = vtanh.pop %v642
          %v645 = vtanh.pop %v643
          %646 = vmatprep.subr.mxu0 0.0
          %647 = vmatpush1.xpose.msra.mxu0 %v644
          %648 = vmatprep.subr.mxu0 0.0
          %649 = vmatpush1.xpose.msra.mxu0 %v645
          %650 = vmatprep.subr.mxu0 0.0
          %651 = vmatpush1.xpose.msra.mxu0 0.0
          %652 = vmatprep.subr.mxu0 0.0
          %653 = vmatpush1.xpose.msra.mxu0 0.0
          %654 = vmatprep.subr.mxu0 0.0
          %655 = vmatpush1.xpose.msra.mxu0 0.0
          %656 = vmatprep.subr.mxu0 0.0
          %657 = vmatpush1.xpose.msra.mxu0 0.0
          %658 = vmatprep.subr.mxu0 0.0
          %659 = vmatpush1.xpose.msra.mxu0 0.0
          %660 = vmatprep.subr.mxu0 0.0
          %661 = vmatpush1.xpose.msra.mxu0 0.0
          %662 = vmatprep.subr.mxu0 0.0
          %663 = vmatpush1.xpose.msra.mxu0 0.0
          %664 = vmatprep.subr.mxu0 0.0
          %665 = vmatpush1.xpose.msra.mxu0 0.0
          %666 = vmatprep.subr.mxu0 0.0
          %667 = vmatpush1.xpose.msra.mxu0 0.0
          %668 = vmatprep.subr.mxu0 0.0
          %669 = vmatpush1.xpose.msra.mxu0 0.0
          %670 = vmatprep.subr.mxu0 0.0
          %671 = vmatpush1.xpose.msra.mxu0 0.0
          %672 = vmatprep.subr.mxu0 0.0
          %673 = vmatpush1.xpose.msra.mxu0 0.0
          %674 = vmatprep.subr.mxu0 0.0
          %675 = vmatpush1.xpose.msra.mxu0 0.0
          %676 = vmatprep.subr.mxu0 0.0
          %677 = vmatpush1.xpose.msra.mxu0 0.0
          %678 = vmatprep.subr.mxu0 0.0
          %679 = vmatpush1.xpose.msra.mxu0 0.0
          %680 = vmatprep.subr.mxu0 0.0
          %681 = vmatpush1.xpose.msra.mxu0 0.0
          %682 = vmatprep.subr.mxu0 0.0
          %683 = vmatpush1.xpose.msra.mxu0 0.0
          %684 = vmatprep.subr.mxu0 0.0
          %685 = vmatpush1.xpose.msra.mxu0 0.0
          %686 = vmatprep.subr.mxu0 0.0
          %687 = vmatpush1.xpose.msra.mxu0 0.0
          %688 = vmatprep.subr.mxu0 0.0
          %689 = vmatpush1.xpose.msra.mxu0 0.0
          %690 = vmatprep.subr.mxu0 0.0
          %691 = vmatpush1.xpose.msra.mxu0 0.0
          %692 = vmatprep.subr.mxu0 0.0
          %693 = vmatpush1.xpose.msra.mxu0 0.0
          %694 = vmatprep.subr.mxu0 0.0
          %695 = vmatpush1.xpose.msra.mxu0 0.0
          %696 = vmatprep.subr.mxu0 0.0
          %697 = vmatpush1.xpose.msra.mxu0 0.0
          %698 = vmatprep.subr.mxu0 0.0
          %699 = vmatpush1.xpose.msra.mxu0 0.0
          %700 = vmatprep.subr.mxu0 0.0
          %701 = vmatpush1.xpose.msra.mxu0 0.0
          %702 = vmatprep.subr.mxu0 0.0
          %703 = vmatpush1.xpose.msra.mxu0 0.0
          %704 = vmatprep.subr.mxu0 0.0
          %705 = vmatpush1.xpose.msra.mxu0 0.0
          %706 = vmatprep.subr.mxu0 0.0
          %707 = vmatpush1.xpose.msra.mxu0 0.0
          %708 = vmatprep.subr.mxu0 0.0
          %709 = vmatpush1.xpose.msra.mxu0 0.0
          %710 = vmatprep.mubr.f32.mxu0 0.0
          %711 = vmatmul.mubr.f32.gmra.mrb[0].mxu0 %v626
          %v712 = vpop.f32.mrb[0].mxu0
          %v713 = vadd.f32 0.0, %v712
          %v714 = vpop.f32.mrb[0].mxu0
          %715 = vdwg.mxu0
          %s716 = scalar_lea.vmem [#allocation4], %s629
          %vm717 = vcmask 122880
          %718 = vst.msk [vmem:[%s716] sm:$0x1] %vm717, %v713
        $region65: #{tpu_custom_call.1} parent=47 // loop_footer
          %s633 = sadd.s32 1, %s629
        $region66: #{tpu_custom_call.1} parent=47 // loop_footer_branch
          %628 = sbr.rel target = $region62
        $region67: #{tpu_custom_call.1} parent=47 // loop_exit
          _
        %v719 = vld [vmem:[#allocation4] sm:$0xff]
        %v720 = vld [vmem:[#allocation4 + $0x8] sm:$0xff]
        %v721 = vstv %s627
        %v722 = vadd.f32 %v719, %v721
        %v723 = vadd.f32 %v720, %v721
        %vm724 = vcmask 130048
        %v725 = vsel %vm724, %v722, -inf
        %726 = vmax.xlane.f32.xlu0 %v725
        %v727 = vpop.xlane.xlu0 %726
        %v728 = vsel %vm724, %v723, -inf
        %729 = vmax.xlane.f32.xlu0 %v728
        %v730 = vpop.xlane.xlu0 %729
        %v731 = vsub.f32 %v722, %v727
        %v732 = vsub.f32 %v723, %v730
        %v733 = vmul.f32 %v731, 1.442695
        %v734 = vpow.pop %v733
        %v735 = vmul.f32 %v732, 1.442695
        %v736 = vpow.pop %v735
        %v737 = vsel %vm724, %v734, 0.0
        %738 = vadd.xlane.f32.xlu0 %v737
        %v739 = vpop.xlane.xlu0 %738
        %v740 = vsel %vm724, %v736, 0.0
        %741 = vadd.xlane.f32.xlu0 %v740
        %v742 = vpop.xlane.xlu0 %741
        %v743 = vrcp.pop %v739
        %v744 = vrcp.pop %v742
        %v745 = vmul.f32 %v734, %v743
        %v746 = vmul.f32 %v736, %v744
        %v747 = vpack.c.bf16 %v746, %v745
        %v748 = vld [vmem:[#allocation2] sm:$0xff]
        %v750 = vsel %vm724, %v747, 0
        %752 = vmatprep.subr.bf16.mxu0 0
        %753 = vmatpush1.bf16.msra.mxu0 %v748
        %754 = vmatprep.subr.bf16.mxu0 0
        %755 = vmatpush1.bf16.msra.mxu0 0
        %756 = vmatprep.subr.bf16.mxu0 0
        %757 = vmatpush1.bf16.msra.mxu0 0
        %758 = vmatprep.subr.bf16.mxu0 0
        %759 = vmatpush1.bf16.msra.mxu0 0
        %760 = vmatprep.subr.bf16.mxu0 0
        %761 = vmatpush1.bf16.msra.mxu0 0
        %762 = vmatprep.subr.bf16.mxu0 0
        %763 = vmatpush1.bf16.msra.mxu0 0
        %764 = vmatprep.subr.bf16.mxu0 0
        %765 = vmatpush1.bf16.msra.mxu0 0
        %766 = vmatprep.subr.bf16.mxu0 0
        %767 = vmatpush1.bf16.msra.mxu0 0
        %768 = vmatprep.subr.bf16.mxu0 0
        %769 = vmatpush1.bf16.msra.mxu0 0
        %770 = vmatprep.subr.bf16.mxu0 0
        %771 = vmatpush1.bf16.msra.mxu0 0
        %772 = vmatprep.subr.bf16.mxu0 0
        %773 = vmatpush1.bf16.msra.mxu0 0
        %774 = vmatprep.subr.bf16.mxu0 0
        %775 = vmatpush1.bf16.msra.mxu0 0
        %776 = vmatprep.subr.bf16.mxu0 0
        %777 = vmatpush1.bf16.msra.mxu0 0
        %778 = vmatprep.subr.bf16.mxu0 0
        %779 = vmatpush1.bf16.msra.mxu0 0
        %780 = vmatprep.subr.bf16.mxu0 0
        %781 = vmatpush1.bf16.msra.mxu0 0
        %782 = vmatprep.subr.bf16.mxu0 0
        %783 = vmatpush1.bf16.msra.mxu0 0
        %784 = vmatprep.mubr.bf16.mxu0 0
        %785 = vmatmul.mubr.bf16.gmra.mrb[0].mxu0 %v750
        %v786 = vpop.f32.mrb[0].mxu0
        %v787 = vadd.f32 0.0, %v786
        %v788 = vpop.f32.mrb[0].mxu0
        %v789 = vpop.f32.mrb[0].mxu0
        %v790 = vadd.f32 0.0, %v789
        %v791 = vpop.f32.mrb[0].mxu0
        %792 = vdwg.mxu0
        %793 = vst [vmem:[%s326] sm:$0xff] %v787
        %794 = vst [vmem:[%s326 + $0x8] sm:$0xff] %v790
        %s795 = sand.u32 %s186, 1
        %s796 = scalar_lea.sflag [#allocation8], %s795
        %s797 = sand.u32 %s186, 1
        %s798 = smul.addr %s797, 16
        %s799 = scalar_lea.vmem [#allocation12], %s798
        // Predicated region
        $region68: #{tpu_custom_call.1} parent=47 // pred_check
          %p800 = pneg %p196
        $region69: #{tpu_custom_call.1} parent=47 // pred_check_branch
          %802 = sbr.rel (%p800) target = $region71
        $region70: #{tpu_custom_call.1} parent=47 // pred_region
          %s804 = ssub.s32 256, 256
          %805 = vsyncadd %s796, %s804
          %s806 = smul.addr %s26, 2
          %s807 = smul.addr %s806, 128
          %s808 = scalar_lea.hbm %s7, %s807
          %s809 = sshll.u32 %s799, 4
          %s810 = int_to_ptr.vmem [resolvable:$true] %s809
          %815 = dma.vmem_to_hbm [thread:$0]  %s810, 256, %s808, %s796, 128, 128, 8
        $region71: #{tpu_custom_call.1} parent=47 // pred_fallthru
          _
      $region48: #{tpu_custom_call.1} parent=5 // pred_fallthru
        _
      %p816 = scmp.le.s32.totalorder 2, %s21
      // Predicated region
      $region72: #{tpu_custom_call.1} parent=5 // pred_check
        %p817 = pneg %p816
      $region73: #{tpu_custom_call.1} parent=5 // pred_check_branch
        %819 = sbr.rel (%p817) target = $region75
      $region74: #{tpu_custom_call.1} parent=5 // pred_region
        %s820 = ssub.s32 %s21, 2
        // Predicated region
        $region76: #{tpu_custom_call.1} parent=74 // pred_check
          %p821 = pneg %p202
        $region77: #{tpu_custom_call.1} parent=74 // pred_check_branch
          %823 = sbr.rel (%p821) target = $region79
        $region78: #{tpu_custom_call.1} parent=74 // pred_region
          %s824 = sand.u32 %s187, 1
          %s825 = scalar_lea.sflag [#allocation8], %s824
          %s826 = sand.u32 %s187, 1
          %s827 = smul.addr %s826, 16
          %s828 = scalar_lea.vmem [#allocation12], %s827
          %829 = dma.done %s825, 256
        $region79: #{tpu_custom_call.1} parent=74 // pred_fallthru
          _
      $region75: #{tpu_custom_call.1} parent=5 // pred_fallthru
        _
    $region6: #{tpu_custom_call.1} parent=1 // loop_footer
      %s25 = sadd.s32 1, %s21
    $region7: #{tpu_custom_call.1} parent=1 // loop_footer_branch
      %20 = sbr.rel target = $region3
    $region8: #{tpu_custom_call.1} parent=1 // loop_exit
      _
    %830 = vsyncpa [#allocation7], 1
    %s831 = scalar_lea.sflag [#allocation7], 1
    %832 = vsyncpa %s831, 1
    %833 = vsyncpa [#allocation10], 1
    %834 = vsyncpa [#allocation8], 1
    %s835 = scalar_lea.sflag [#allocation8], 1
    %836 = vsyncpa %s835, 1

</llo_original>
